<compile_context>
chip_gen: v7x
topology: tpu7x:2x2x1
jax: 0.10.0
libtpu: 0.0.40
codegen_flags: <defaults>
</compile_context>

<pallas_src>
import functools

import jax
import jax.numpy as jnp
from jax import lax
from jax.experimental import pallas as pl
from jax.experimental.pallas import tpu as pltpu


def fused_mha_kernel(x_ref, wqkv_ref, bqkv_ref, wo_ref, bo_ref, o_ref, *,
                     batch, seq, num_heads, head_dim, model_dim):
    # x_ref:    (1, batch*seq, D)      bf16, D == model_dim
    # wqkv_ref: (D, 3*H*head_dim)      bf16, pre-transposed, [Q heads | K heads | V heads]
    #                                  (Q block already scaled by 1/sqrt(seq))
    # bqkv_ref: (1, 3*H*head_dim)      f32  (Q block already scaled by 1/sqrt(seq))
    # wo_ref:   (H*head_dim, D)        bf16, pre-transposed
    # bo_ref:   (1, D)                 f32
    # o_ref:    (1, batch*seq, D)      f32
    x = x_ref[0]                                                    # (B*S, D) bf16
    HD = num_heads * head_dim

    # Single packed projection for all heads and all batches: one MXU matmul.
    qkv = jnp.dot(x, wqkv_ref[...],
                  preferred_element_type=jnp.float32) + bqkv_ref[...]   # (B*S, 3*H*d) f32

    acc = jnp.zeros((batch, seq, model_dim), jnp.float32)

    for h in range(num_heads):                                      # static unroll
        lo = h * head_dim
        hi = lo + head_dim
        # Splitting the leading (sublane) dim (B*S -> B, S) is layout-free.
        q = qkv[:, lo:hi].reshape(batch, seq, head_dim).astype(jnp.bfloat16)
        k = qkv[:, HD + lo:HD + hi].reshape(batch, seq, head_dim).astype(jnp.bfloat16)
        v = qkv[:, 2 * HD + lo:2 * HD + hi].reshape(batch, seq, head_dim).astype(jnp.bfloat16)

        # Batched QK^T over the batch dim; the 1/sqrt(S) scale was folded into
        # the packed Q weights host-side, so no per-score multiply here.
        scores = lax.dot_general(
            q, k, (((2,), (2,)), ((0,), (0,))),
            preferred_element_type=jnp.float32)                     # (B, S, S) f32

        # Numerically stable softmax in f32; denominator via approx reciprocal (EUP).
        scores = scores - jnp.max(scores, axis=-1, keepdims=True)
        e = jnp.exp(scores)
        p = e * pl.reciprocal(jnp.sum(e, axis=-1, keepdims=True), approx=True)

        pv = lax.dot_general(
            p.astype(jnp.bfloat16), v, (((2,), (1,)), ((0,), (0,))),
            preferred_element_type=jnp.float32)                     # (B, S, d) f32

        # Accumulate this head's contribution to the output projection directly:
        # no head concat, no (S, H*d) intermediate.
        wo_h = wo_ref[lo:hi, :]                                     # (d, D) bf16 (sublane slice)
        acc = acc + lax.dot_general(
            pv.astype(jnp.bfloat16), wo_h, (((2,), (0,)), ((), ())),
            preferred_element_type=jnp.float32)                     # (B, S, D) f32

    out = acc + bo_ref[...]                                         # broadcast (1, D)
    o_ref[0] = out.reshape(batch * seq, model_dim)                  # leading-dim merge, layout-free


def multi_head_attention(x, wq, bq, wk, bk, wv, bv, wo, bo, *, batch_parallel=False):
    """x: (B, S, D); wq/wk/wv: (H, D, D) (PyTorch Linear convention, y = x @ W.T + b);
    bq/bk/bv: (H, 1, D); wo: (D, H*D); bo: (1, D). Returns (B, S, D) f32.

    batch_parallel=False (default): fold all batches into one grid step (best on
    single-TC v5e/v6e).  batch_parallel=True: grid=(B,) "parallel" so each v7x
    TensorCore takes one batch."""
    B, S, D = x.shape
    H = wq.shape[0]
    HD = H * D

    # PyTorch: scale = q.size(1) ** 0.5 == sqrt(seq_len). Fold 1/sqrt(S) into the
    # packed Q weights/bias (done once at pack time, removes per-score multiplies).
    inv_scale = 1.0 / (float(S) ** 0.5)

    def pack_w(w, scale=1.0):   # (H, D_out, D_in) -> (D_in, H*D_out)  (pre-transposed)
        return jnp.transpose(w, (2, 0, 1)).reshape(D, HD) * scale

    def pack_b(b, scale=1.0):   # (H, 1, D) -> (H*D,)
        return b.reshape(HD) * scale

    w_qkv = jnp.concatenate(
        [pack_w(wq, inv_scale), pack_w(wk), pack_w(wv)], axis=1).astype(jnp.bfloat16)  # (D, 3*H*D)
    b_qkv = jnp.concatenate(
        [pack_b(bq, inv_scale), pack_b(bk), pack_b(bv)]).reshape(1, 3 * HD)            # (1, 3*H*D) f32
    wo_t = wo.T.astype(jnp.bfloat16)                                                   # (H*D, D)
    bo2 = bo.reshape(1, D)                                                             # (1, D) f32

    G = B if batch_parallel else 1      # grid steps
    bpb = B // G                        # batches handled per grid step
    xg = x.reshape(G, bpb * S, D).astype(jnp.bfloat16)

    kernel = functools.partial(fused_mha_kernel, batch=bpb, seq=S,
                               num_heads=H, head_dim=D, model_dim=D)

    out = pl.pallas_call(
        kernel,
        out_shape=jax.ShapeDtypeStruct((G, bpb * S, D), jnp.float32),
        grid=(G,),
        in_specs=[
            pl.BlockSpec((1, bpb * S, D), lambda g: (g, 0, 0)),   # activations
            pl.BlockSpec((D, 3 * HD), lambda g: (0, 0)),          # packed QKV weights (resident)
            pl.BlockSpec((1, 3 * HD), lambda g: (0, 0)),          # packed QKV biases  (resident)
            pl.BlockSpec((HD, D), lambda g: (0, 0)),              # output weight (pre-transposed)
            pl.BlockSpec((1, D), lambda g: (0, 0)),               # output bias
        ],
        out_specs=pl.BlockSpec((1, bpb * S, D), lambda g: (g, 0, 0)),
        compiler_params=pltpu.CompilerParams(
            dimension_semantics=("parallel",)),
    )(xg, w_qkv, b_qkv, wo_t, bo2)

    return out.reshape(B, S, D)


def reference_mha(x, wq, bq, wk, bk, wv, bv, wo, bo):
    """Pure-JAX f32 reference reproducing the PyTorch forward exactly."""
    B, S, D = x.shape
    H = wq.shape[0]
    outs = []
    for h in range(H):
        q = x @ wq[h].T + bq[h]
        k = x @ wk[h].T + bk[h]
        v = x @ wv[h].T + bv[h]
        scale = float(S) ** 0.5           # q.size(1) ** 0.5
        scores = jax.nn.softmax(jnp.einsum("bsd,btd->bst", q, k) / scale, axis=-1)
        outs.append(jnp.einsum("bst,btd->bsd", scores, v))
    s = jnp.concatenate(outs, axis=-1)
    return s @ wo.T + bo


if __name__ == "__main__":
    B, S, D, H = 2, 8, 32, 4

    key = jax.random.PRNGKey(0)
    ks = jax.random.split(key, 9)
    x = jax.random.normal(ks[0], (B, S, D), dtype=jnp.float32)

    wq = jax.random.normal(ks[1], (H, D, D), dtype=jnp.float32) * 0.05
    bq = jax.random.normal(ks[2], (H, 1, D), dtype=jnp.float32) * 0.01
    wk = jax.random.normal(ks[3], (H, D, D), dtype=jnp.float32) * 0.05
    bk = jax.random.normal(ks[4], (H, 1, D), dtype=jnp.float32) * 0.01
    wv = jax.random.normal(ks[5], (H, D, D), dtype=jnp.float32) * 0.05
    bv = jax.random.normal(ks[6], (H, 1, D), dtype=jnp.float32) * 0.01
    wo = jax.random.normal(ks[7], (D, H * D), dtype=jnp.float32) * 0.05
    bo = jax.random.normal(ks[8], (1, D), dtype=jnp.float32) * 0.01

    # Default: batch folded into a single grid step (v5e/v6e friendly).
    # On v7x, pass batch_parallel=True to map one batch per TensorCore.
    out = multi_head_attention(x, wq, bq, wk, bk, wv, bv, wo, bo)
    out = jax.block_until_ready(out)

    ref = reference_mha(x, wq, bq, wk, bk, wv, bv, wo, bo)
    assert out.shape == (B, S, D)
    # Tolerance accommodates bf16 MXU operands (f32 accumulate) and the EUP
    # approximate reciprocal in the softmax denominator.
    assert jnp.allclose(out, ref, atol=2e-2, rtol=2e-2), "mismatch vs reference"

    print("KERNEL_OK")
</pallas_src>

<mosaic_0001>
module attributes {stable_mosaic.version = 11 : i64} {
  func.func @fused_mha_kernel(%arg0: i32, %arg1: memref<1x16x32xbf16, #tpu.memory_space<vmem>>, %arg2: memref<32x384xbf16, #tpu.memory_space<vmem>>, %arg3: memref<1x384xf32, #tpu.memory_space<vmem>>, %arg4: memref<128x32xbf16, #tpu.memory_space<vmem>>, %arg5: memref<1x32xf32, #tpu.memory_space<vmem>>, %arg6: memref<1x16x32xf32, #tpu.memory_space<vmem>>) attributes {dimension_semantics = [#tpu.dimension_semantics<parallel>], iteration_bounds = array<i64: 1>, scalar_prefetch = 0 : i64, scratch_operands = 0 : i64, tpu.core_type = #tpu.core_type<tc>, window_params = [{transform_indices = @transform_0, window_bounds = array<i64: 1, 16, 32>}, {pipeline_mode = #tpu.pipeline_mode<synchronous>, transform_indices = @transform_1, window_bounds = array<i64: 32, 384>}, {pipeline_mode = #tpu.pipeline_mode<synchronous>, transform_indices = @transform_2, window_bounds = array<i64: 1, 384>}, {pipeline_mode = #tpu.pipeline_mode<synchronous>, transform_indices = @transform_3, window_bounds = array<i64: 128, 32>}, {pipeline_mode = #tpu.pipeline_mode<synchronous>, transform_indices = @transform_4, window_bounds = array<i64: 1, 32>}, {transform_indices = @transform_5, window_bounds = array<i64: 1, 16, 32>}]} {
    %c0 = arith.constant 0 : index
    %c0_0 = arith.constant 0 : index
    %c0_1 = arith.constant 0 : index
    %0 = vector.load %arg1[%c0, %c0_0, %c0_1] : memref<1x16x32xbf16, #tpu.memory_space<vmem>>, vector<1x16x32xbf16>
    %1 = vector.shape_cast %0 : vector<1x16x32xbf16> to vector<16x32xbf16>
    %c0_2 = arith.constant 0 : index
    %c0_3 = arith.constant 0 : index
    %2 = vector.load %arg2[%c0_2, %c0_3] : memref<32x384xbf16, #tpu.memory_space<vmem>>, vector<32x384xbf16>
    %cst = arith.constant dense<0.000000e+00> : vector<16x384xf32>
    %3 = tpu.matmul %1, %2, %cst {dimension_numbers = #tpu.dot_dimension_numbers<[1], [0], [0], [1], [0, 0, 1, 1], [], []>} : vector<16x32xbf16>, vector<32x384xbf16>, vector<16x384xf32> -> vector<16x384xf32>
    %c0_4 = arith.constant 0 : index
    %c0_5 = arith.constant 0 : index
    %4 = vector.load %arg3[%c0_4, %c0_5] : memref<1x384xf32, #tpu.memory_space<vmem>>, vector<1x384xf32>
    %5 = vector.broadcast %4 : vector<1x384xf32> to vector<16x384xf32>
    %6 = arith.addf %3, %5 : vector<16x384xf32>
    %cst_6 = arith.constant 0.000000e+00 : f32
    %7 = vector.broadcast %cst_6 : f32 to vector<2x8x32xf32>
    %8 = vector.extract_strided_slice %6 {offsets = [0, 0], sizes = [16, 32], strides = [1, 1]} : vector<16x384xf32> to vector<16x32xf32>
    %9 = vector.shape_cast %8 : vector<16x32xf32> to vector<2x8x32xf32>
    %10 = arith.truncf %9 : vector<2x8x32xf32> to vector<2x8x32xbf16>
    %11 = vector.extract_strided_slice %6 {offsets = [0, 128], sizes = [16, 32], strides = [1, 1]} : vector<16x384xf32> to vector<16x32xf32>
    %12 = vector.shape_cast %11 : vector<16x32xf32> to vector<2x8x32xf32>
    %13 = arith.truncf %12 : vector<2x8x32xf32> to vector<2x8x32xbf16>
    %14 = vector.extract_strided_slice %6 {offsets = [0, 256], sizes = [16, 32], strides = [1, 1]} : vector<16x384xf32> to vector<16x32xf32>
    %15 = vector.shape_cast %14 : vector<16x32xf32> to vector<2x8x32xf32>
    %16 = arith.truncf %15 : vector<2x8x32xf32> to vector<2x8x32xbf16>
    %cst_7 = arith.constant dense<0.000000e+00> : vector<2x8x8xf32>
    %17 = tpu.matmul %10, %13, %cst_7 {dimension_numbers = #tpu.dot_dimension_numbers<[2], [2], [1], [1], [0, 0, 0, 1, 1, 1], [0], [0]>} : vector<2x8x32xbf16>, vector<2x8x32xbf16>, vector<2x8x8xf32> -> vector<2x8x8xf32>
    %cst_8 = arith.constant dense<0xFF800000> : vector<2x8xf32>
    %18 = vector.multi_reduction <maximumf>, %17, %cst_8 [2] : vector<2x8x8xf32> to vector<2x8xf32>
    %19 = vector.shape_cast %18 : vector<2x8xf32> to vector<2x8x1xf32>
    %20 = vector.broadcast %19 : vector<2x8x1xf32> to vector<2x8x8xf32>
    %21 = arith.subf %17, %20 : vector<2x8x8xf32>
    %22 = math.exp %21 : vector<2x8x8xf32>
    %cst_9 = arith.constant dense<0.000000e+00> : vector<2x8xf32>
    %23 = vector.multi_reduction <add>, %22, %cst_9 [2] : vector<2x8x8xf32> to vector<2x8xf32>
    %24 = vector.shape_cast %23 : vector<2x8xf32> to vector<2x8x1xf32>
    %25 = tpu.reciprocal %24 {approx = true} : vector<2x8x1xf32> -> vector<2x8x1xf32>
    %26 = vector.broadcast %25 : vector<2x8x1xf32> to vector<2x8x8xf32>
    %27 = arith.mulf %22, %26 : vector<2x8x8xf32>
    %28 = arith.truncf %27 : vector<2x8x8xf32> to vector<2x8x8xbf16>
    %cst_10 = arith.constant dense<0.000000e+00> : vector<2x8x32xf32>
    %29 = tpu.matmul %28, %16, %cst_10 {dimension_numbers = #tpu.dot_dimension_numbers<[2], [1], [1], [2], [0, 0, 0, 1, 1, 2], [0], [0]>} : vector<2x8x8xbf16>, vector<2x8x32xbf16>, vector<2x8x32xf32> -> vector<2x8x32xf32>
    %c0_11 = arith.constant 0 : index
    %c0_12 = arith.constant 0 : index
    %30 = vector.load %arg4[%c0_11, %c0_12] : memref<128x32xbf16, #tpu.memory_space<vmem>>, vector<32x32xbf16>
    %31 = arith.truncf %29 : vector<2x8x32xf32> to vector<2x8x32xbf16>
    %cst_13 = arith.constant dense<0.000000e+00> : vector<2x8x32xf32>
    %32 = tpu.matmul %31, %30, %cst_13 {dimension_numbers = #tpu.dot_dimension_numbers<[2], [0], [0, 1], [1], [0, 0, 0, 1, 1, 1], [], []>} : vector<2x8x32xbf16>, vector<32x32xbf16>, vector<2x8x32xf32> -> vector<2x8x32xf32>
    %33 = arith.addf %7, %32 : vector<2x8x32xf32>
    %34 = vector.extract_strided_slice %6 {offsets = [0, 32], sizes = [16, 32], strides = [1, 1]} : vector<16x384xf32> to vector<16x32xf32>
    %35 = vector.shape_cast %34 : vector<16x32xf32> to vector<2x8x32xf32>
    %36 = arith.truncf %35 : vector<2x8x32xf32> to vector<2x8x32xbf16>
    %37 = vector.extract_strided_slice %6 {offsets = [0, 160], sizes = [16, 32], strides = [1, 1]} : vector<16x384xf32> to vector<16x32xf32>
    %38 = vector.shape_cast %37 : vector<16x32xf32> to vector<2x8x32xf32>
    %39 = arith.truncf %38 : vector<2x8x32xf32> to vector<2x8x32xbf16>
    %40 = vector.extract_strided_slice %6 {offsets = [0, 288], sizes = [16, 32], strides = [1, 1]} : vector<16x384xf32> to vector<16x32xf32>
    %41 = vector.shape_cast %40 : vector<16x32xf32> to vector<2x8x32xf32>
    %42 = arith.truncf %41 : vector<2x8x32xf32> to vector<2x8x32xbf16>
    %cst_14 = arith.constant dense<0.000000e+00> : vector<2x8x8xf32>
    %43 = tpu.matmul %36, %39, %cst_14 {dimension_numbers = #tpu.dot_dimension_numbers<[2], [2], [1], [1], [0, 0, 0, 1, 1, 1], [0], [0]>} : vector<2x8x32xbf16>, vector<2x8x32xbf16>, vector<2x8x8xf32> -> vector<2x8x8xf32>
    %cst_15 = arith.constant dense<0xFF800000> : vector<2x8xf32>
    %44 = vector.multi_reduction <maximumf>, %43, %cst_15 [2] : vector<2x8x8xf32> to vector<2x8xf32>
    %45 = vector.shape_cast %44 : vector<2x8xf32> to vector<2x8x1xf32>
    %46 = vector.broadcast %45 : vector<2x8x1xf32> to vector<2x8x8xf32>
    %47 = arith.subf %43, %46 : vector<2x8x8xf32>
    %48 = math.exp %47 : vector<2x8x8xf32>
    %cst_16 = arith.constant dense<0.000000e+00> : vector<2x8xf32>
    %49 = vector.multi_reduction <add>, %48, %cst_16 [2] : vector<2x8x8xf32> to vector<2x8xf32>
    %50 = vector.shape_cast %49 : vector<2x8xf32> to vector<2x8x1xf32>
    %51 = tpu.reciprocal %50 {approx = true} : vector<2x8x1xf32> -> vector<2x8x1xf32>
    %52 = vector.broadcast %51 : vector<2x8x1xf32> to vector<2x8x8xf32>
    %53 = arith.mulf %48, %52 : vector<2x8x8xf32>
    %54 = arith.truncf %53 : vector<2x8x8xf32> to vector<2x8x8xbf16>
    %cst_17 = arith.constant dense<0.000000e+00> : vector<2x8x32xf32>
    %55 = tpu.matmul %54, %42, %cst_17 {dimension_numbers = #tpu.dot_dimension_numbers<[2], [1], [1], [2], [0, 0, 0, 1, 1, 2], [0], [0]>} : vector<2x8x8xbf16>, vector<2x8x32xbf16>, vector<2x8x32xf32> -> vector<2x8x32xf32>
    %c32 = arith.constant 32 : index
    %c0_18 = arith.constant 0 : index
    %56 = vector.load %arg4[%c32, %c0_18] : memref<128x32xbf16, #tpu.memory_space<vmem>>, vector<32x32xbf16>
    %57 = arith.truncf %55 : vector<2x8x32xf32> to vector<2x8x32xbf16>
    %cst_19 = arith.constant dense<0.000000e+00> : vector<2x8x32xf32>
    %58 = tpu.matmul %57, %56, %cst_19 {dimension_numbers = #tpu.dot_dimension_numbers<[2], [0], [0, 1], [1], [0, 0, 0, 1, 1, 1], [], []>} : vector<2x8x32xbf16>, vector<32x32xbf16>, vector<2x8x32xf32> -> vector<2x8x32xf32>
    %59 = arith.addf %33, %58 : vector<2x8x32xf32>
    %60 = vector.extract_strided_slice %6 {offsets = [0, 64], sizes = [16, 32], strides = [1, 1]} : vector<16x384xf32> to vector<16x32xf32>
    %61 = vector.shape_cast %60 : vector<16x32xf32> to vector<2x8x32xf32>
    %62 = arith.truncf %61 : vector<2x8x32xf32> to vector<2x8x32xbf16>
    %63 = vector.extract_strided_slice %6 {offsets = [0, 192], sizes = [16, 32], strides = [1, 1]} : vector<16x384xf32> to vector<16x32xf32>
    %64 = vector.shape_cast %63 : vector<16x32xf32> to vector<2x8x32xf32>
    %65 = arith.truncf %64 : vector<2x8x32xf32> to vector<2x8x32xbf16>
    %66 = vector.extract_strided_slice %6 {offsets = [0, 320], sizes = [16, 32], strides = [1, 1]} : vector<16x384xf32> to vector<16x32xf32>
    %67 = vector.shape_cast %66 : vector<16x32xf32> to vector<2x8x32xf32>
    %68 = arith.truncf %67 : vector<2x8x32xf32> to vector<2x8x32xbf16>
    %cst_20 = arith.constant dense<0.000000e+00> : vector<2x8x8xf32>
    %69 = tpu.matmul %62, %65, %cst_20 {dimension_numbers = #tpu.dot_dimension_numbers<[2], [2], [1], [1], [0, 0, 0, 1, 1, 1], [0], [0]>} : vector<2x8x32xbf16>, vector<2x8x32xbf16>, vector<2x8x8xf32> -> vector<2x8x8xf32>
    %cst_21 = arith.constant dense<0xFF800000> : vector<2x8xf32>
    %70 = vector.multi_reduction <maximumf>, %69, %cst_21 [2] : vector<2x8x8xf32> to vector<2x8xf32>
    %71 = vector.shape_cast %70 : vector<2x8xf32> to vector<2x8x1xf32>
    %72 = vector.broadcast %71 : vector<2x8x1xf32> to vector<2x8x8xf32>
    %73 = arith.subf %69, %72 : vector<2x8x8xf32>
    %74 = math.exp %73 : vector<2x8x8xf32>
    %cst_22 = arith.constant dense<0.000000e+00> : vector<2x8xf32>
    %75 = vector.multi_reduction <add>, %74, %cst_22 [2] : vector<2x8x8xf32> to vector<2x8xf32>
    %76 = vector.shape_cast %75 : vector<2x8xf32> to vector<2x8x1xf32>
    %77 = tpu.reciprocal %76 {approx = true} : vector<2x8x1xf32> -> vector<2x8x1xf32>
    %78 = vector.broadcast %77 : vector<2x8x1xf32> to vector<2x8x8xf32>
    %79 = arith.mulf %74, %78 : vector<2x8x8xf32>
    %80 = arith.truncf %79 : vector<2x8x8xf32> to vector<2x8x8xbf16>
    %cst_23 = arith.constant dense<0.000000e+00> : vector<2x8x32xf32>
    %81 = tpu.matmul %80, %68, %cst_23 {dimension_numbers = #tpu.dot_dimension_numbers<[2], [1], [1], [2], [0, 0, 0, 1, 1, 2], [0], [0]>} : vector<2x8x8xbf16>, vector<2x8x32xbf16>, vector<2x8x32xf32> -> vector<2x8x32xf32>
    %c64 = arith.constant 64 : index
    %c0_24 = arith.constant 0 : index
    %82 = vector.load %arg4[%c64, %c0_24] : memref<128x32xbf16, #tpu.memory_space<vmem>>, vector<32x32xbf16>
    %83 = arith.truncf %81 : vector<2x8x32xf32> to vector<2x8x32xbf16>
    %cst_25 = arith.constant dense<0.000000e+00> : vector<2x8x32xf32>
    %84 = tpu.matmul %83, %82, %cst_25 {dimension_numbers = #tpu.dot_dimension_numbers<[2], [0], [0, 1], [1], [0, 0, 0, 1, 1, 1], [], []>} : vector<2x8x32xbf16>, vector<32x32xbf16>, vector<2x8x32xf32> -> vector<2x8x32xf32>
    %85 = arith.addf %59, %84 : vector<2x8x32xf32>
    %86 = vector.extract_strided_slice %6 {offsets = [0, 96], sizes = [16, 32], strides = [1, 1]} : vector<16x384xf32> to vector<16x32xf32>
    %87 = vector.shape_cast %86 : vector<16x32xf32> to vector<2x8x32xf32>
    %88 = arith.truncf %87 : vector<2x8x32xf32> to vector<2x8x32xbf16>
    %89 = vector.extract_strided_slice %6 {offsets = [0, 224], sizes = [16, 32], strides = [1, 1]} : vector<16x384xf32> to vector<16x32xf32>
    %90 = vector.shape_cast %89 : vector<16x32xf32> to vector<2x8x32xf32>
    %91 = arith.truncf %90 : vector<2x8x32xf32> to vector<2x8x32xbf16>
    %92 = vector.extract_strided_slice %6 {offsets = [0, 352], sizes = [16, 32], strides = [1, 1]} : vector<16x384xf32> to vector<16x32xf32>
    %93 = vector.shape_cast %92 : vector<16x32xf32> to vector<2x8x32xf32>
    %94 = arith.truncf %93 : vector<2x8x32xf32> to vector<2x8x32xbf16>
    %cst_26 = arith.constant dense<0.000000e+00> : vector<2x8x8xf32>
    %95 = tpu.matmul %88, %91, %cst_26 {dimension_numbers = #tpu.dot_dimension_numbers<[2], [2], [1], [1], [0, 0, 0, 1, 1, 1], [0], [0]>} : vector<2x8x32xbf16>, vector<2x8x32xbf16>, vector<2x8x8xf32> -> vector<2x8x8xf32>
    %cst_27 = arith.constant dense<0xFF800000> : vector<2x8xf32>
    %96 = vector.multi_reduction <maximumf>, %95, %cst_27 [2] : vector<2x8x8xf32> to vector<2x8xf32>
    %97 = vector.shape_cast %96 : vector<2x8xf32> to vector<2x8x1xf32>
    %98 = vector.broadcast %97 : vector<2x8x1xf32> to vector<2x8x8xf32>
    %99 = arith.subf %95, %98 : vector<2x8x8xf32>
    %100 = math.exp %99 : vector<2x8x8xf32>
    %cst_28 = arith.constant dense<0.000000e+00> : vector<2x8xf32>
    %101 = vector.multi_reduction <add>, %100, %cst_28 [2] : vector<2x8x8xf32> to vector<2x8xf32>
    %102 = vector.shape_cast %101 : vector<2x8xf32> to vector<2x8x1xf32>
    %103 = tpu.reciprocal %102 {approx = true} : vector<2x8x1xf32> -> vector<2x8x1xf32>
    %104 = vector.broadcast %103 : vector<2x8x1xf32> to vector<2x8x8xf32>
    %105 = arith.mulf %100, %104 : vector<2x8x8xf32>
    %106 = arith.truncf %105 : vector<2x8x8xf32> to vector<2x8x8xbf16>
    %cst_29 = arith.constant dense<0.000000e+00> : vector<2x8x32xf32>
    %107 = tpu.matmul %106, %94, %cst_29 {dimension_numbers = #tpu.dot_dimension_numbers<[2], [1], [1], [2], [0, 0, 0, 1, 1, 2], [0], [0]>} : vector<2x8x8xbf16>, vector<2x8x32xbf16>, vector<2x8x32xf32> -> vector<2x8x32xf32>
    %c96 = arith.constant 96 : index
    %c0_30 = arith.constant 0 : index
    %108 = vector.load %arg4[%c96, %c0_30] : memref<128x32xbf16, #tpu.memory_space<vmem>>, vector<32x32xbf16>
    %109 = arith.truncf %107 : vector<2x8x32xf32> to vector<2x8x32xbf16>
    %cst_31 = arith.constant dense<0.000000e+00> : vector<2x8x32xf32>
    %110 = tpu.matmul %109, %108, %cst_31 {dimension_numbers = #tpu.dot_dimension_numbers<[2], [0], [0, 1], [1], [0, 0, 0, 1, 1, 1], [], []>} : vector<2x8x32xbf16>, vector<32x32xbf16>, vector<2x8x32xf32> -> vector<2x8x32xf32>
    %111 = arith.addf %85, %110 : vector<2x8x32xf32>
    %c0_32 = arith.constant 0 : index
    %c0_33 = arith.constant 0 : index
    %112 = vector.load %arg5[%c0_32, %c0_33] : memref<1x32xf32, #tpu.memory_space<vmem>>, vector<1x32xf32>
    %113 = vector.shape_cast %112 : vector<1x32xf32> to vector<1x1x32xf32>
    %114 = vector.broadcast %113 : vector<1x1x32xf32> to vector<2x8x32xf32>
    %115 = arith.addf %111, %114 : vector<2x8x32xf32>
    %116 = vector.shape_cast %115 : vector<2x8x32xf32> to vector<16x32xf32>
    %c0_34 = arith.constant 0 : index
    %c0_35 = arith.constant 0 : index
    %c0_36 = arith.constant 0 : index
    %117 = vector.load %arg6[%c0_34, %c0_35, %c0_36] : memref<1x16x32xf32, #tpu.memory_space<vmem>>, vector<1x16x32xf32>
    %118 = vector.shape_cast %117 : vector<1x16x32xf32> to vector<16x32xf32>
    %119 = vector.shape_cast %116 : vector<16x32xf32> to vector<1x16x32xf32>
    tpu.vector_store %arg6[%c0_34, %c0_35, %c0_36], %119 {strides = array<i32>} : memref<1x16x32xf32, #tpu.memory_space<vmem>>, vector<1x16x32xf32>,
    return
  }
  func.func @transform_0(%arg0: i32) -> (i32, i32, i32) {
    %c0_i32 = arith.constant 0 : i32
    %c0_i32_0 = arith.constant 0 : i32
    %c0_i32_1 = arith.constant 0 : i32
    return %arg0, %c0_i32, %c0_i32_0 : i32, i32, i32
  }
  func.func @transform_1(%arg0: i32) -> (i32, i32) {
    %c0_i32 = arith.constant 0 : i32
    %c0_i32_0 = arith.constant 0 : i32
    %c0_i32_1 = arith.constant 0 : i32
    return %c0_i32, %c0_i32_0 : i32, i32
  }
  func.func @transform_2(%arg0: i32) -> (i32, i32) {
    %c0_i32 = arith.constant 0 : i32
    %c0_i32_0 = arith.constant 0 : i32
    %c0_i32_1 = arith.constant 0 : i32
    return %c0_i32, %c0_i32_0 : i32, i32
  }
  func.func @transform_3(%arg0: i32) -> (i32, i32) {
    %c0_i32 = arith.constant 0 : i32
    %c0_i32_0 = arith.constant 0 : i32
    %c0_i32_1 = arith.constant 0 : i32
    return %c0_i32, %c0_i32_0 : i32, i32
  }
  func.func @transform_4(%arg0: i32) -> (i32, i32) {
    %c0_i32 = arith.constant 0 : i32
    %c0_i32_0 = arith.constant 0 : i32
    %c0_i32_1 = arith.constant 0 : i32
    return %c0_i32, %c0_i32_0 : i32, i32
  }
  func.func @transform_5(%arg0: i32) -> (i32, i32, i32) {
    %c0_i32 = arith.constant 0 : i32
    %c0_i32_0 = arith.constant 0 : i32
    %c0_i32_1 = arith.constant 0 : i32
    return %arg0, %c0_i32, %c0_i32_0 : i32, i32, i32
  }
}

</mosaic_0001>

<llo_original>
// kernel: tpu_custom_call.1
$region0: #{tpu_custom_call.1}
  #allocation0 [shape = 'u32[]', space=smem, size = 0x4, offset = 0x4, fixed_abs, tag = 'smem constant byte address 0x4 - core index']
  #allocation1 [shape = 'u32[144,128]{1,0:T(1,128)}', space=vmem, size = 0x12000, scoped, tag = 'internal scratch']
  %s0 = inlined_call_operand.vmem [shape: bf16[1,16,32], index: 0, kind: input, shape index: {}]
  %s1 = inlined_call_operand.vmem [shape: bf16[32,384], index: 1, kind: input, shape index: {}]
  %s2 = inlined_call_operand.vmem [shape: f32[1,384], index: 2, kind: input, shape index: {}]
  %s3 = inlined_call_operand.vmem [shape: bf16[128,32], index: 3, kind: input, shape index: {}]
  %s4 = inlined_call_operand.vmem [shape: f32[1,32], index: 4, kind: input, shape index: {}]
  %s5 = inlined_call_operand.hbm [shape: f32[1,16,32], index: 5, kind: output, shape index: {}]
  %s6 = sld [smem:[#allocation0]]
  $region30: #{tpu_custom_call.1} parent=0
    _
  %s8 = ssub.s32 1, %s6
  %s9 = scalar_select 0, %s8, %s6
  $region1: #{tpu_custom_call.1} parent=0
    #allocation2 [shape = 'u8[8192]{0}', space=vmem, size = 0x2000, scoped, tag = 'output window, operand 0, single buffered']
    #allocation3 [shape = 's32[1]{0}', space=sflag, size = 0x4, scoped, tag = 'scoped memory for tpu_custom_call.1']
    %10 = vsyncpa [#allocation3], 0
    // Predicated region
    $region2: #{tpu_custom_call.1} parent=1 // pred_check
      _
    $region3: #{tpu_custom_call.1} parent=1 // pred_check_branch
      %12 = sbr.rel (0) target = $region5
    $region4: #{tpu_custom_call.1} parent=1 // pred_region
      _
    $region5: #{tpu_custom_call.1} parent=1 // pred_fallthru
      _
    // Predicated region
    $region6: #{tpu_custom_call.1} parent=1 // pred_check
      _
    $region7: #{tpu_custom_call.1} parent=1 // pred_check_branch
      %14 = sbr.rel (0) target = $region9
    $region8: #{tpu_custom_call.1} parent=1 // pred_region
      _
    $region9: #{tpu_custom_call.1} parent=1 // pred_fallthru
      _
    // Predicated region
    $region10: #{tpu_custom_call.1} parent=1 // pred_check
      _
    $region11: #{tpu_custom_call.1} parent=1 // pred_check_branch
      %16 = sbr.rel (0) target = $region13
    $region12: #{tpu_custom_call.1} parent=1 // pred_region
      _
    $region13: #{tpu_custom_call.1} parent=1 // pred_fallthru
      _
    // Predicated region
    $region14: #{tpu_custom_call.1} parent=1 // pred_check
      _
    $region15: #{tpu_custom_call.1} parent=1 // pred_check_branch
      %18 = sbr.rel (0) target = $region17
    $region16: #{tpu_custom_call.1} parent=1 // pred_region
      _
    $region17: #{tpu_custom_call.1} parent=1 // pred_fallthru
      _
    // Predicated region
    $region18: #{tpu_custom_call.1} parent=1 // pred_check
      _
    $region19: #{tpu_custom_call.1} parent=1 // pred_check_branch
      %20 = sbr.rel (0) target = $region21
    $region20: #{tpu_custom_call.1} parent=1 // pred_region
      _
    $region21: #{tpu_custom_call.1} parent=1 // pred_fallthru
      _
    %v22 = vld [vmem:[%s0] sm:$0xf]
    %v23 = vld [vmem:[%s0 + $0x4] sm:$0xf]
    %v24 = vld [vmem:[%s1] sm:$0xff]
    %v25 = vld [vmem:[%s1 + $0x8] sm:$0xf]
    %v26 = vld [vmem:[%s1 + $0xc] sm:$0xff]
    %v27 = vld [vmem:[%s1 + $0x14] sm:$0xf]
    %v28 = vld [vmem:[%s1 + $0x18] sm:$0xff]
    %v29 = vld [vmem:[%s1 + $0x20] sm:$0xf]
    %v30 = vld [vmem:[%s1 + $0x24] sm:$0xff]
    %v31 = vld [vmem:[%s1 + $0x2c] sm:$0xf]
    %v32 = vld [vmem:[%s2] sm:$0x7]
    %v34 = vlaneseq
    %v35 = vshrl.u32 %v34, 7
    %v36 = vsub.s32 0, %v35
    %v37 = vrot.slane %v32, %v36
    %v38 = vlaneseq
    %v39 = vshrl.u32 %v38, 7
    %v40 = vsub.s32 1, %v39
    %v41 = vrot.slane %v32, %v40
    %v42 = vlaneseq
    %v43 = vshrl.u32 %v42, 7
    %v44 = vsub.s32 2, %v43
    %v45 = vrot.slane %v32, %v44
    %v51 = vunpack.c.l.b16 %v22
    %v52 = vunpack.c.l.b16 %v23
    %v53 = vpack.c.b16 %v52, %v51
    %v62 = vunpack.c.l.b16 %v24
    %v63 = vunpack.c.h.b16 %v24
    %v64 = vunpack.c.l.b16 %v25
    %v65 = vunpack.c.l.b16 %v26
    %v66 = vunpack.c.h.b16 %v26
    %v67 = vunpack.c.l.b16 %v27
    %v68 = vunpack.c.l.b16 %v28
    %v69 = vunpack.c.h.b16 %v28
    %v70 = vunpack.c.l.b16 %v29
    %v71 = vunpack.c.l.b16 %v30
    %v72 = vunpack.c.h.b16 %v30
    %v73 = vunpack.c.l.b16 %v31
    %v74 = vpack.c.b16 %v65, %v62
    %v75 = vpack.c.b16 %v66, %v63
    %v76 = vpack.c.b16 %v67, %v64
    %v77 = vpack.c.b16 %v71, %v68
    %v78 = vpack.c.b16 %v72, %v69
    %v79 = vpack.c.b16 %v73, %v70
    %vm86 = vcmask 261120
    %v88 = vsel %vm86, %v53, 0
    %90 = vmatprep.subr.bf16.mxu0 %v75
    %91 = vmatpush1.bf16.msra.mxu0 %v74
    %92 = vmatprep.subr.bf16.mxu0 %v78
    %93 = vmatpush1.bf16.msra.mxu0 %v77
    %94 = vmatprep.subr.bf16.mxu0 0
    %95 = vmatpush1.bf16.msra.mxu0 0
    %96 = vmatprep.subr.bf16.mxu0 0
    %97 = vmatpush1.bf16.msra.mxu0 0
    %98 = vmatprep.subr.bf16.mxu0 0
    %99 = vmatpush1.bf16.msra.mxu0 0
    %100 = vmatprep.subr.bf16.mxu0 0
    %101 = vmatpush1.bf16.msra.mxu0 0
    %102 = vmatprep.subr.bf16.mxu0 0
    %103 = vmatpush1.bf16.msra.mxu0 0
    %104 = vmatprep.subr.bf16.mxu0 0
    %105 = vmatpush1.bf16.msra.mxu0 0
    %106 = vmatprep.subr.bf16.mxu0 0
    %107 = vmatpush1.bf16.msra.mxu0 0
    %108 = vmatprep.subr.bf16.mxu0 0
    %109 = vmatpush1.bf16.msra.mxu0 0
    %110 = vmatprep.subr.bf16.mxu0 0
    %111 = vmatpush1.bf16.msra.mxu0 0
    %112 = vmatprep.subr.bf16.mxu0 0
    %113 = vmatpush1.bf16.msra.mxu0 0
    %114 = vmatprep.subr.bf16.mxu0 0
    %115 = vmatpush1.bf16.msra.mxu0 0
    %116 = vmatprep.subr.bf16.mxu0 0
    %117 = vmatpush1.bf16.msra.mxu0 0
    %118 = vmatprep.subr.bf16.mxu0 0
    %119 = vmatpush1.bf16.msra.mxu0 0
    %120 = vmatprep.subr.bf16.mxu0 0
    %121 = vmatpush1.bf16.msra.mxu0 0
    %122 = vmatprep.mubr.bf16.mxu0 0
    %123 = vmatmul.mubr.bf16.gmra.mrb[0].mxu0 %v88
    %v124 = vpop.f32.mrb[0].mxu0
    %v125 = vadd.f32 %v37, %v124
    %v126 = vpop.f32.mrb[0].mxu0
    %v127 = vadd.f32 %v41, %v126
    %v128 = vpop.f32.mrb[0].mxu0
    %v129 = vadd.f32 %v37, %v128
    %v130 = vpop.f32.mrb[0].mxu0
    %v131 = vadd.f32 %v41, %v130
    %132 = vdwg.mxu0
    %133 = vmatprep.subr.bf16.mxu0 0
    %134 = vmatpush1.bf16.msra.mxu0 %v76
    %135 = vmatprep.subr.bf16.mxu0 0
    %136 = vmatpush1.bf16.msra.mxu0 %v79
    %137 = vmatprep.subr.bf16.mxu0 0
    %138 = vmatpush1.bf16.msra.mxu0 0
    %139 = vmatprep.subr.bf16.mxu0 0
    %140 = vmatpush1.bf16.msra.mxu0 0
    %141 = vmatprep.subr.bf16.mxu0 0
    %142 = vmatpush1.bf16.msra.mxu0 0
    %143 = vmatprep.subr.bf16.mxu0 0
    %144 = vmatpush1.bf16.msra.mxu0 0
    %145 = vmatprep.subr.bf16.mxu0 0
    %146 = vmatpush1.bf16.msra.mxu0 0
    %147 = vmatprep.subr.bf16.mxu0 0
    %148 = vmatpush1.bf16.msra.mxu0 0
    %149 = vmatprep.subr.bf16.mxu0 0
    %150 = vmatpush1.bf16.msra.mxu0 0
    %151 = vmatprep.subr.bf16.mxu0 0
    %152 = vmatpush1.bf16.msra.mxu0 0
    %153 = vmatprep.subr.bf16.mxu0 0
    %154 = vmatpush1.bf16.msra.mxu0 0
    %155 = vmatprep.subr.bf16.mxu0 0
    %156 = vmatpush1.bf16.msra.mxu0 0
    %157 = vmatprep.subr.bf16.mxu0 0
    %158 = vmatpush1.bf16.msra.mxu0 0
    %159 = vmatprep.subr.bf16.mxu0 0
    %160 = vmatpush1.bf16.msra.mxu0 0
    %161 = vmatprep.subr.bf16.mxu0 0
    %162 = vmatpush1.bf16.msra.mxu0 0
    %163 = vmatprep.subr.bf16.mxu0 0
    %164 = vmatpush1.bf16.msra.mxu0 0
    %165 = vmatprep.mubr.bf16.mxu0 0
    %166 = vmatmul.mubr.bf16.gmra.mrb[0].mxu0 %v88
    %v167 = vpop.f32.mrb[0].mxu0
    %v168 = vadd.f32 %v45, %v167
    %v169 = vpop.f32.mrb[0].mxu0
    %v170 = vpop.f32.mrb[0].mxu0
    %v171 = vadd.f32 %v45, %v170
    %v172 = vpop.f32.mrb[0].mxu0
    %173 = vdwg.mxu0
    %v174 = vpack.c.bf16 %v125, %v125
    %v175 = vpack.c.bf16 %v129, %v129
    %v176 = vpack.c.bf16 %v127, %v127
    %v177 = vpack.c.bf16 %v131, %v131
    %v178 = vpack.c.bf16 %v168, %v168
    %v179 = vpack.c.bf16 %v171, %v171
    %v181 = vsel %vm86, %v174, 0
    %v184 = vsel %vm86, %v176, 0
    %186 = vmatprep.subr.bf16.mxu0 0
    %187 = vmatpush1.bf16.xpose.msra.mxu0 %v184
    %188 = vmatprep.subr.bf16.mxu0 0
    %189 = vmatpush1.bf16.xpose.msra.mxu0 0
    %190 = vmatprep.subr.bf16.mxu0 0
    %191 = vmatpush1.bf16.xpose.msra.mxu0 0
    %192 = vmatprep.subr.bf16.mxu0 0
    %193 = vmatpush1.bf16.xpose.msra.mxu0 0
    %194 = vmatprep.subr.bf16.mxu0 0
    %195 = vmatpush1.bf16.xpose.msra.mxu0 0
    %196 = vmatprep.subr.bf16.mxu0 0
    %197 = vmatpush1.bf16.xpose.msra.mxu0 0
    %198 = vmatprep.subr.bf16.mxu0 0
    %199 = vmatpush1.bf16.xpose.msra.mxu0 0
    %200 = vmatprep.subr.bf16.mxu0 0
    %201 = vmatpush1.bf16.xpose.msra.mxu0 0
    %202 = vmatprep.subr.bf16.mxu0 0
    %203 = vmatpush1.bf16.xpose.msra.mxu0 0
    %204 = vmatprep.subr.bf16.mxu0 0
    %205 = vmatpush1.bf16.xpose.msra.mxu0 0
    %206 = vmatprep.subr.bf16.mxu0 0
    %207 = vmatpush1.bf16.xpose.msra.mxu0 0
    %208 = vmatprep.subr.bf16.mxu0 0
    %209 = vmatpush1.bf16.xpose.msra.mxu0 0
    %210 = vmatprep.subr.bf16.mxu0 0
    %211 = vmatpush1.bf16.xpose.msra.mxu0 0
    %212 = vmatprep.subr.bf16.mxu0 0
    %213 = vmatpush1.bf16.xpose.msra.mxu0 0
    %214 = vmatprep.subr.bf16.mxu0 0
    %215 = vmatpush1.bf16.xpose.msra.mxu0 0
    %216 = vmatprep.subr.bf16.mxu0 0
    %217 = vmatpush1.bf16.xpose.msra.mxu0 0
    %218 = vmatprep.mubr.bf16.mxu0 0
    %219 = vmatmul.mubr.bf16.gmra.mrb[0].mxu0 %v181
    %v220 = vpop.f32.mrb[0].mxu0
    %v221 = vadd.f32 0.0, %v220
    %v222 = vpop.f32.mrb[0].mxu0
    %v223 = vpop.f32.mrb[0].mxu0
    %v224 = vpop.f32.mrb[0].mxu0
    %225 = vdwg.mxu0
    %v227 = vsel %vm86, %v175, 0
    %v230 = vsel %vm86, %v177, 0
    %232 = vmatprep.subr.bf16.mxu0 0
    %233 = vmatpush1.bf16.xpose.msra.mxu0 %v230
    %234 = vmatprep.subr.bf16.mxu0 0
    %235 = vmatpush1.bf16.xpose.msra.mxu0 0
    %236 = vmatprep.subr.bf16.mxu0 0
    %237 = vmatpush1.bf16.xpose.msra.mxu0 0
    %238 = vmatprep.subr.bf16.mxu0 0
    %239 = vmatpush1.bf16.xpose.msra.mxu0 0
    %240 = vmatprep.subr.bf16.mxu0 0
    %241 = vmatpush1.bf16.xpose.msra.mxu0 0
    %242 = vmatprep.subr.bf16.mxu0 0
    %243 = vmatpush1.bf16.xpose.msra.mxu0 0
    %244 = vmatprep.subr.bf16.mxu0 0
    %245 = vmatpush1.bf16.xpose.msra.mxu0 0
    %246 = vmatprep.subr.bf16.mxu0 0
    %247 = vmatpush1.bf16.xpose.msra.mxu0 0
    %248 = vmatprep.subr.bf16.mxu0 0
    %249 = vmatpush1.bf16.xpose.msra.mxu0 0
    %250 = vmatprep.subr.bf16.mxu0 0
    %251 = vmatpush1.bf16.xpose.msra.mxu0 0
    %252 = vmatprep.subr.bf16.mxu0 0
    %253 = vmatpush1.bf16.xpose.msra.mxu0 0
    %254 = vmatprep.subr.bf16.mxu0 0
    %255 = vmatpush1.bf16.xpose.msra.mxu0 0
    %256 = vmatprep.subr.bf16.mxu0 0
    %257 = vmatpush1.bf16.xpose.msra.mxu0 0
    %258 = vmatprep.subr.bf16.mxu0 0
    %259 = vmatpush1.bf16.xpose.msra.mxu0 0
    %260 = vmatprep.subr.bf16.mxu0 0
    %261 = vmatpush1.bf16.xpose.msra.mxu0 0
    %262 = vmatprep.subr.bf16.mxu0 0
    %263 = vmatpush1.bf16.xpose.msra.mxu0 0
    %264 = vmatprep.mubr.bf16.mxu0 0
    %265 = vmatmul.mubr.bf16.gmra.mrb[0].mxu0 %v227
    %v266 = vpop.f32.mrb[0].mxu0
    %v267 = vadd.f32 0.0, %v266
    %v268 = vpop.f32.mrb[0].mxu0
    %v269 = vpop.f32.mrb[0].mxu0
    %v270 = vpop.f32.mrb[0].mxu0
    %271 = vdwg.mxu0
    %vm272 = vcmask 64512
    %v273 = vsel %vm272, %v221, -inf
    %274 = vmax.xlane.f32.xlu0 %v273
    %v275 = vpop.xlane.xlu0 %274
    %v276 = vsel %vm272, %v267, -inf
    %277 = vmax.xlane.f32.xlu0 %v276
    %v278 = vpop.xlane.xlu0 %277
    %v279 = vsub.f32 %v221, %v275
    %v280 = vsub.f32 %v267, %v278
    %v281 = vmul.f32 %v279, 1.442695
    %v282 = vpow.pop %v281
    %v283 = vmul.f32 %v280, 1.442695
    %v284 = vpow.pop %v283
    %v285 = vsel %vm272, %v282, 0.0
    %286 = vadd.xlane.f32.xlu0 %v285
    %v287 = vpop.xlane.xlu0 %286
    %v288 = vsel %vm272, %v284, 0.0
    %289 = vadd.xlane.f32.xlu0 %v288
    %v290 = vpop.xlane.xlu0 %289
    %v291 = vrcp.pop %v287
    %v292 = vrcp.pop %v290
    %v293 = vmul.f32 %v282, %v291
    %v294 = vmul.f32 %v284, %v292
    %v295 = vpack.c.bf16 %v293, %v293
    %v296 = vpack.c.bf16 %v294, %v294
    %v298 = vsel %vm272, %v295, 0
    %vm300 = vcmask 1043456
    %v302 = vsel %vm300, %v178, 0
    %304 = vmatprep.subr.bf16.mxu0 0
    %305 = vmatpush1.bf16.msra.mxu0 %v302
    %306 = vmatprep.subr.bf16.mxu0 0
    %307 = vmatpush1.bf16.msra.mxu0 0
    %308 = vmatprep.subr.bf16.mxu0 0
    %309 = vmatpush1.bf16.msra.mxu0 0
    %310 = vmatprep.subr.bf16.mxu0 0
    %311 = vmatpush1.bf16.msra.mxu0 0
    %312 = vmatprep.subr.bf16.mxu0 0
    %313 = vmatpush1.bf16.msra.mxu0 0
    %314 = vmatprep.subr.bf16.mxu0 0
    %315 = vmatpush1.bf16.msra.mxu0 0
    %316 = vmatprep.subr.bf16.mxu0 0
    %317 = vmatpush1.bf16.msra.mxu0 0
    %318 = vmatprep.subr.bf16.mxu0 0
    %319 = vmatpush1.bf16.msra.mxu0 0
    %320 = vmatprep.subr.bf16.mxu0 0
    %321 = vmatpush1.bf16.msra.mxu0 0
    %322 = vmatprep.subr.bf16.mxu0 0
    %323 = vmatpush1.bf16.msra.mxu0 0
    %324 = vmatprep.subr.bf16.mxu0 0
    %325 = vmatpush1.bf16.msra.mxu0 0
    %326 = vmatprep.subr.bf16.mxu0 0
    %327 = vmatpush1.bf16.msra.mxu0 0
    %328 = vmatprep.subr.bf16.mxu0 0
    %329 = vmatpush1.bf16.msra.mxu0 0
    %330 = vmatprep.subr.bf16.mxu0 0
    %331 = vmatpush1.bf16.msra.mxu0 0
    %332 = vmatprep.subr.bf16.mxu0 0
    %333 = vmatpush1.bf16.msra.mxu0 0
    %334 = vmatprep.subr.bf16.mxu0 0
    %335 = vmatpush1.bf16.msra.mxu0 0
    %336 = vmatprep.mubr.bf16.mxu0 0
    %337 = vmatmul.mubr.bf16.gmra.mrb[0].mxu0 %v298
    %v338 = vpop.f32.mrb[0].mxu0
    %v339 = vadd.f32 0.0, %v338
    %v340 = vpop.f32.mrb[0].mxu0
    %v341 = vpop.f32.mrb[0].mxu0
    %v342 = vpop.f32.mrb[0].mxu0
    %343 = vdwg.mxu0
    %v345 = vsel %vm272, %v296, 0
    %v348 = vsel %vm300, %v179, 0
    %350 = vmatprep.subr.bf16.mxu0 0
    %351 = vmatpush1.bf16.msra.mxu0 %v348
    %352 = vmatprep.subr.bf16.mxu0 0
    %353 = vmatpush1.bf16.msra.mxu0 0
    %354 = vmatprep.subr.bf16.mxu0 0
    %355 = vmatpush1.bf16.msra.mxu0 0
    %356 = vmatprep.subr.bf16.mxu0 0
    %357 = vmatpush1.bf16.msra.mxu0 0
    %358 = vmatprep.subr.bf16.mxu0 0
    %359 = vmatpush1.bf16.msra.mxu0 0
    %360 = vmatprep.subr.bf16.mxu0 0
    %361 = vmatpush1.bf16.msra.mxu0 0
    %362 = vmatprep.subr.bf16.mxu0 0
    %363 = vmatpush1.bf16.msra.mxu0 0
    %364 = vmatprep.subr.bf16.mxu0 0
    %365 = vmatpush1.bf16.msra.mxu0 0
    %366 = vmatprep.subr.bf16.mxu0 0
    %367 = vmatpush1.bf16.msra.mxu0 0
    %368 = vmatprep.subr.bf16.mxu0 0
    %369 = vmatpush1.bf16.msra.mxu0 0
    %370 = vmatprep.subr.bf16.mxu0 0
    %371 = vmatpush1.bf16.msra.mxu0 0
    %372 = vmatprep.subr.bf16.mxu0 0
    %373 = vmatpush1.bf16.msra.mxu0 0
    %374 = vmatprep.subr.bf16.mxu0 0
    %375 = vmatpush1.bf16.msra.mxu0 0
    %376 = vmatprep.subr.bf16.mxu0 0
    %377 = vmatpush1.bf16.msra.mxu0 0
    %378 = vmatprep.subr.bf16.mxu0 0
    %379 = vmatpush1.bf16.msra.mxu0 0
    %380 = vmatprep.subr.bf16.mxu0 0
    %381 = vmatpush1.bf16.msra.mxu0 0
    %382 = vmatprep.mubr.bf16.mxu0 0
    %383 = vmatmul.mubr.bf16.gmra.mrb[0].mxu0 %v345
    %v384 = vpop.f32.mrb[0].mxu0
    %v385 = vadd.f32 0.0, %v384
    %v386 = vpop.f32.mrb[0].mxu0
    %v387 = vpop.f32.mrb[0].mxu0
    %v388 = vpop.f32.mrb[0].mxu0
    %389 = vdwg.mxu0
    %v390 = vld [vmem:[%s3] sm:$0xf]
    %v391 = vld [vmem:[%s3 + $0x4] sm:$0xf]
    %v392 = vld [vmem:[%s3 + $0x8] sm:$0xf]
    %v393 = vld [vmem:[%s3 + $0xc] sm:$0xf]
    %v394 = vpack.c.bf16 %v339, %v339
    %v395 = vpack.c.bf16 %v385, %v385
    %397 = vrot.lane.b32.xlu0 %v174, 96
    %v398 = vpop.permute.xlu0 %397
    %400 = vrot.lane.b32.xlu0 %v176, 96
    %v401 = vpop.permute.xlu0 %400
    %v403 = vsel %vm86, %v398, 0
    %v406 = vsel %vm86, %v401, 0
    %408 = vmatprep.subr.bf16.mxu0 0
    %409 = vmatpush1.bf16.xpose.msra.mxu0 %v406
    %410 = vmatprep.subr.bf16.mxu0 0
    %411 = vmatpush1.bf16.xpose.msra.mxu0 0
    %412 = vmatprep.subr.bf16.mxu0 0
    %413 = vmatpush1.bf16.xpose.msra.mxu0 0
    %414 = vmatprep.subr.bf16.mxu0 0
    %415 = vmatpush1.bf16.xpose.msra.mxu0 0
    %416 = vmatprep.subr.bf16.mxu0 0
    %417 = vmatpush1.bf16.xpose.msra.mxu0 0
    %418 = vmatprep.subr.bf16.mxu0 0
    %419 = vmatpush1.bf16.xpose.msra.mxu0 0
    %420 = vmatprep.subr.bf16.mxu0 0
    %421 = vmatpush1.bf16.xpose.msra.mxu0 0
    %422 = vmatprep.subr.bf16.mxu0 0
    %423 = vmatpush1.bf16.xpose.msra.mxu0 0
    %424 = vmatprep.subr.bf16.mxu0 0
    %425 = vmatpush1.bf16.xpose.msra.mxu0 0
    %426 = vmatprep.subr.bf16.mxu0 0
    %427 = vmatpush1.bf16.xpose.msra.mxu0 0
    %428 = vmatprep.subr.bf16.mxu0 0
    %429 = vmatpush1.bf16.xpose.msra.mxu0 0
    %430 = vmatprep.subr.bf16.mxu0 0
    %431 = vmatpush1.bf16.xpose.msra.mxu0 0
    %432 = vmatprep.subr.bf16.mxu0 0
    %433 = vmatpush1.bf16.xpose.msra.mxu0 0
    %434 = vmatprep.subr.bf16.mxu0 0
    %435 = vmatpush1.bf16.xpose.msra.mxu0 0
    %436 = vmatprep.subr.bf16.mxu0 0
    %437 = vmatpush1.bf16.xpose.msra.mxu0 0
    %438 = vmatprep.subr.bf16.mxu0 0
    %439 = vmatpush1.bf16.xpose.msra.mxu0 0
    %440 = vmatprep.mubr.bf16.mxu0 0
    %441 = vmatmul.mubr.bf16.gmra.mrb[0].mxu0 %v403
    %v442 = vpop.f32.mrb[0].mxu0
    %v443 = vadd.f32 0.0, %v442
    %v444 = vpop.f32.mrb[0].mxu0
    %v445 = vpop.f32.mrb[0].mxu0
    %v446 = vpop.f32.mrb[0].mxu0
    %447 = vdwg.mxu0
    %449 = vrot.lane.b32.xlu0 %v175, 96
    %v450 = vpop.permute.xlu0 %449
    %452 = vrot.lane.b32.xlu0 %v177, 96
    %v453 = vpop.permute.xlu0 %452
    %v455 = vsel %vm86, %v450, 0
    %v458 = vsel %vm86, %v453, 0
    %460 = vmatprep.subr.bf16.mxu0 0
    %461 = vmatpush1.bf16.xpose.msra.mxu0 %v458
    %462 = vmatprep.subr.bf16.mxu0 0
    %463 = vmatpush1.bf16.xpose.msra.mxu0 0
    %464 = vmatprep.subr.bf16.mxu0 0
    %465 = vmatpush1.bf16.xpose.msra.mxu0 0
    %466 = vmatprep.subr.bf16.mxu0 0
    %467 = vmatpush1.bf16.xpose.msra.mxu0 0
    %468 = vmatprep.subr.bf16.mxu0 0
    %469 = vmatpush1.bf16.xpose.msra.mxu0 0
    %470 = vmatprep.subr.bf16.mxu0 0
    %471 = vmatpush1.bf16.xpose.msra.mxu0 0
    %472 = vmatprep.subr.bf16.mxu0 0
    %473 = vmatpush1.bf16.xpose.msra.mxu0 0
    %474 = vmatprep.subr.bf16.mxu0 0
    %475 = vmatpush1.bf16.xpose.msra.mxu0 0
    %476 = vmatprep.subr.bf16.mxu0 0
    %477 = vmatpush1.bf16.xpose.msra.mxu0 0
    %478 = vmatprep.subr.bf16.mxu0 0
    %479 = vmatpush1.bf16.xpose.msra.mxu0 0
    %480 = vmatprep.subr.bf16.mxu0 0
    %481 = vmatpush1.bf16.xpose.msra.mxu0 0
    %482 = vmatprep.subr.bf16.mxu0 0
    %483 = vmatpush1.bf16.xpose.msra.mxu0 0
    %484 = vmatprep.subr.bf16.mxu0 0
    %485 = vmatpush1.bf16.xpose.msra.mxu0 0
    %486 = vmatprep.subr.bf16.mxu0 0
    %487 = vmatpush1.bf16.xpose.msra.mxu0 0
    %488 = vmatprep.subr.bf16.mxu0 0
    %489 = vmatpush1.bf16.xpose.msra.mxu0 0
    %490 = vmatprep.subr.bf16.mxu0 0
    %491 = vmatpush1.bf16.xpose.msra.mxu0 0
    %492 = vmatprep.mubr.bf16.mxu0 0
    %493 = vmatmul.mubr.bf16.gmra.mrb[0].mxu0 %v455
    %v494 = vpop.f32.mrb[0].mxu0
    %v495 = vadd.f32 0.0, %v494
    %v496 = vpop.f32.mrb[0].mxu0
    %v497 = vpop.f32.mrb[0].mxu0
    %v498 = vpop.f32.mrb[0].mxu0
    %499 = vdwg.mxu0
    %v500 = vsel %vm272, %v443, -inf
    %501 = vmax.xlane.f32.xlu0 %v500
    %v502 = vpop.xlane.xlu0 %501
    %v503 = vsel %vm272, %v495, -inf
    %504 = vmax.xlane.f32.xlu0 %v503
    %v505 = vpop.xlane.xlu0 %504
    %v506 = vsub.f32 %v443, %v502
    %v507 = vsub.f32 %v495, %v505
    %v508 = vmul.f32 %v506, 1.442695
    %v509 = vpow.pop %v508
    %v510 = vmul.f32 %v507, 1.442695
    %v511 = vpow.pop %v510
    %v512 = vsel %vm272, %v509, 0.0
    %513 = vadd.xlane.f32.xlu0 %v512
    %v514 = vpop.xlane.xlu0 %513
    %v515 = vsel %vm272, %v511, 0.0
    %516 = vadd.xlane.f32.xlu0 %v515
    %v517 = vpop.xlane.xlu0 %516
    %v518 = vrcp.pop %v514
    %v519 = vrcp.pop %v517
    %v520 = vmul.f32 %v509, %v518
    %v521 = vmul.f32 %v511, %v519
    %v522 = vpack.c.bf16 %v520, %v520
    %v523 = vpack.c.bf16 %v521, %v521
    %525 = vrot.lane.b32.xlu0 %v178, 96
    %v526 = vpop.permute.xlu0 %525
    %v528 = vsel %vm272, %v522, 0
    %v531 = vsel %vm300, %v526, 0
    %533 = vmatprep.subr.bf16.mxu0 0
    %534 = vmatpush1.bf16.msra.mxu0 %v531
    %535 = vmatprep.subr.bf16.mxu0 0
    %536 = vmatpush1.bf16.msra.mxu0 0
    %537 = vmatprep.subr.bf16.mxu0 0
    %538 = vmatpush1.bf16.msra.mxu0 0
    %539 = vmatprep.subr.bf16.mxu0 0
    %540 = vmatpush1.bf16.msra.mxu0 0
    %541 = vmatprep.subr.bf16.mxu0 0
    %542 = vmatpush1.bf16.msra.mxu0 0
    %543 = vmatprep.subr.bf16.mxu0 0
    %544 = vmatpush1.bf16.msra.mxu0 0
    %545 = vmatprep.subr.bf16.mxu0 0
    %546 = vmatpush1.bf16.msra.mxu0 0
    %547 = vmatprep.subr.bf16.mxu0 0
    %548 = vmatpush1.bf16.msra.mxu0 0
    %549 = vmatprep.subr.bf16.mxu0 0
    %550 = vmatpush1.bf16.msra.mxu0 0
    %551 = vmatprep.subr.bf16.mxu0 0
    %552 = vmatpush1.bf16.msra.mxu0 0
    %553 = vmatprep.subr.bf16.mxu0 0
    %554 = vmatpush1.bf16.msra.mxu0 0
    %555 = vmatprep.subr.bf16.mxu0 0
    %556 = vmatpush1.bf16.msra.mxu0 0
    %557 = vmatprep.subr.bf16.mxu0 0
    %558 = vmatpush1.bf16.msra.mxu0 0
    %559 = vmatprep.subr.bf16.mxu0 0
    %560 = vmatpush1.bf16.msra.mxu0 0
    %561 = vmatprep.subr.bf16.mxu0 0
    %562 = vmatpush1.bf16.msra.mxu0 0
    %563 = vmatprep.subr.bf16.mxu0 0
    %564 = vmatpush1.bf16.msra.mxu0 0
    %565 = vmatprep.mubr.bf16.mxu0 0
    %566 = vmatmul.mubr.bf16.gmra.mrb[0].mxu0 %v528
    %v567 = vpop.f32.mrb[0].mxu0
    %v568 = vadd.f32 0.0, %v567
    %v569 = vpop.f32.mrb[0].mxu0
    %v570 = vpop.f32.mrb[0].mxu0
    %v571 = vpop.f32.mrb[0].mxu0
    %572 = vdwg.mxu0
    %574 = vrot.lane.b32.xlu0 %v179, 96
    %v575 = vpop.permute.xlu0 %574
    %v577 = vsel %vm272, %v523, 0
    %v580 = vsel %vm300, %v575, 0
    %582 = vmatprep.subr.bf16.mxu0 0
    %583 = vmatpush1.bf16.msra.mxu0 %v580
    %584 = vmatprep.subr.bf16.mxu0 0
    %585 = vmatpush1.bf16.msra.mxu0 0
    %586 = vmatprep.subr.bf16.mxu0 0
    %587 = vmatpush1.bf16.msra.mxu0 0
    %588 = vmatprep.subr.bf16.mxu0 0
    %589 = vmatpush1.bf16.msra.mxu0 0
    %590 = vmatprep.subr.bf16.mxu0 0
    %591 = vmatpush1.bf16.msra.mxu0 0
    %592 = vmatprep.subr.bf16.mxu0 0
    %593 = vmatpush1.bf16.msra.mxu0 0
    %594 = vmatprep.subr.bf16.mxu0 0
    %595 = vmatpush1.bf16.msra.mxu0 0
    %596 = vmatprep.subr.bf16.mxu0 0
    %597 = vmatpush1.bf16.msra.mxu0 0
    %598 = vmatprep.subr.bf16.mxu0 0
    %599 = vmatpush1.bf16.msra.mxu0 0
    %600 = vmatprep.subr.bf16.mxu0 0
    %601 = vmatpush1.bf16.msra.mxu0 0
    %602 = vmatprep.subr.bf16.mxu0 0
    %603 = vmatpush1.bf16.msra.mxu0 0
    %604 = vmatprep.subr.bf16.mxu0 0
    %605 = vmatpush1.bf16.msra.mxu0 0
    %606 = vmatprep.subr.bf16.mxu0 0
    %607 = vmatpush1.bf16.msra.mxu0 0
    %608 = vmatprep.subr.bf16.mxu0 0
    %609 = vmatpush1.bf16.msra.mxu0 0
    %610 = vmatprep.subr.bf16.mxu0 0
    %611 = vmatpush1.bf16.msra.mxu0 0
    %612 = vmatprep.subr.bf16.mxu0 0
    %613 = vmatpush1.bf16.msra.mxu0 0
    %614 = vmatprep.mubr.bf16.mxu0 0
    %615 = vmatmul.mubr.bf16.gmra.mrb[0].mxu0 %v577
    %v616 = vpop.f32.mrb[0].mxu0
    %v617 = vadd.f32 0.0, %v616
    %v618 = vpop.f32.mrb[0].mxu0
    %v619 = vpop.f32.mrb[0].mxu0
    %v620 = vpop.f32.mrb[0].mxu0
    %621 = vdwg.mxu0
    %v622 = vld [vmem:[%s3 + $0x10] sm:$0xf]
    %v623 = vld [vmem:[%s3 + $0x14] sm:$0xf]
    %v624 = vld [vmem:[%s3 + $0x18] sm:$0xf]
    %v625 = vld [vmem:[%s3 + $0x1c] sm:$0xf]
    %v626 = vpack.c.bf16 %v568, %v568
    %v627 = vpack.c.bf16 %v617, %v617
    %v630 = vunpack.c.l.b16 %v626
    %v631 = vunpack.c.l.b16 %v627
    %v632 = vpack.c.b16 %v631, %v630
    %v637 = vunpack.c.l.b16 %v622
    %v638 = vunpack.c.l.b16 %v623
    %v639 = vunpack.c.l.b16 %v624
    %v640 = vunpack.c.l.b16 %v625
    %v641 = vpack.c.b16 %v638, %v637
    %v642 = vpack.c.b16 %v640, %v639
    %v646 = vsel %vm86, %v632, 0
    %648 = vmatprep.subr.bf16.mxu0 0
    %649 = vmatpush1.bf16.msra.mxu0 %v641
    %650 = vmatprep.subr.bf16.mxu0 0
    %651 = vmatpush1.bf16.msra.mxu0 %v642
    %652 = vmatprep.subr.bf16.mxu0 0
    %653 = vmatpush1.bf16.msra.mxu0 0
    %654 = vmatprep.subr.bf16.mxu0 0
    %655 = vmatpush1.bf16.msra.mxu0 0
    %656 = vmatprep.subr.bf16.mxu0 0
    %657 = vmatpush1.bf16.msra.mxu0 0
    %658 = vmatprep.subr.bf16.mxu0 0
    %659 = vmatpush1.bf16.msra.mxu0 0
    %660 = vmatprep.subr.bf16.mxu0 0
    %661 = vmatpush1.bf16.msra.mxu0 0
    %662 = vmatprep.subr.bf16.mxu0 0
    %663 = vmatpush1.bf16.msra.mxu0 0
    %664 = vmatprep.subr.bf16.mxu0 0
    %665 = vmatpush1.bf16.msra.mxu0 0
    %666 = vmatprep.subr.bf16.mxu0 0
    %667 = vmatpush1.bf16.msra.mxu0 0
    %668 = vmatprep.subr.bf16.mxu0 0
    %669 = vmatpush1.bf16.msra.mxu0 0
    %670 = vmatprep.subr.bf16.mxu0 0
    %671 = vmatpush1.bf16.msra.mxu0 0
    %672 = vmatprep.subr.bf16.mxu0 0
    %673 = vmatpush1.bf16.msra.mxu0 0
    %674 = vmatprep.subr.bf16.mxu0 0
    %675 = vmatpush1.bf16.msra.mxu0 0
    %676 = vmatprep.subr.bf16.mxu0 0
    %677 = vmatpush1.bf16.msra.mxu0 0
    %678 = vmatprep.subr.bf16.mxu0 0
    %679 = vmatpush1.bf16.msra.mxu0 0
    %680 = vmatprep.mubr.bf16.mxu0 0
    %681 = vmatmul.mubr.bf16.gmra.mrb[0].mxu0 %v646
    %v682 = vpop.f32.mrb[0].mxu0
    %v683 = vadd.f32 0.0, %v682
    %v684 = vpop.f32.mrb[0].mxu0
    %v685 = vpop.f32.mrb[0].mxu0
    %v686 = vadd.f32 0.0, %v685
    %v687 = vpop.f32.mrb[0].mxu0
    %688 = vdwg.mxu0
    %v691 = vunpack.c.l.b16 %v394
    %v692 = vunpack.c.l.b16 %v395
    %v693 = vpack.c.b16 %v692, %v691
    %v698 = vunpack.c.l.b16 %v390
    %v699 = vunpack.c.l.b16 %v391
    %v700 = vunpack.c.l.b16 %v392
    %v701 = vunpack.c.l.b16 %v393
    %v702 = vpack.c.b16 %v699, %v698
    %v703 = vpack.c.b16 %v701, %v700
    %v707 = vsel %vm86, %v693, 0
    %709 = vmatprep.subr.bf16.mxu0 0
    %710 = vmatpush1.bf16.msra.mxu0 %v702
    %711 = vmatprep.subr.bf16.mxu0 0
    %712 = vmatpush1.bf16.msra.mxu0 %v703
    %713 = vmatprep.subr.bf16.mxu0 0
    %714 = vmatpush1.bf16.msra.mxu0 0
    %715 = vmatprep.subr.bf16.mxu0 0
    %716 = vmatpush1.bf16.msra.mxu0 0
    %717 = vmatprep.subr.bf16.mxu0 0
    %718 = vmatpush1.bf16.msra.mxu0 0
    %719 = vmatprep.subr.bf16.mxu0 0
    %720 = vmatpush1.bf16.msra.mxu0 0
    %721 = vmatprep.subr.bf16.mxu0 0
    %722 = vmatpush1.bf16.msra.mxu0 0
    %723 = vmatprep.subr.bf16.mxu0 0
    %724 = vmatpush1.bf16.msra.mxu0 0
    %725 = vmatprep.subr.bf16.mxu0 0
    %726 = vmatpush1.bf16.msra.mxu0 0
    %727 = vmatprep.subr.bf16.mxu0 0
    %728 = vmatpush1.bf16.msra.mxu0 0
    %729 = vmatprep.subr.bf16.mxu0 0
    %730 = vmatpush1.bf16.msra.mxu0 0
    %731 = vmatprep.subr.bf16.mxu0 0
    %732 = vmatpush1.bf16.msra.mxu0 0
    %733 = vmatprep.subr.bf16.mxu0 0
    %734 = vmatpush1.bf16.msra.mxu0 0
    %735 = vmatprep.subr.bf16.mxu0 0
    %736 = vmatpush1.bf16.msra.mxu0 0
    %737 = vmatprep.subr.bf16.mxu0 0
    %738 = vmatpush1.bf16.msra.mxu0 0
    %739 = vmatprep.subr.bf16.mxu0 0
    %740 = vmatpush1.bf16.msra.mxu0 0
    %741 = vmatprep.mubr.bf16.mxu0 0
    %742 = vmatmul.mubr.bf16.gmra.mrb[0].mxu0 %v707
    %v743 = vpop.f32.mrb[0].mxu0
    %v744 = vadd.f32 %v683, %v743
    %v745 = vpop.f32.mrb[0].mxu0
    %v746 = vpop.f32.mrb[0].mxu0
    %v747 = vadd.f32 %v686, %v746
    %v748 = vpop.f32.mrb[0].mxu0
    %749 = vdwg.mxu0
    %750 = vrot.lane.b32.xlu0 %v174, 64
    %v751 = vpop.permute.xlu0 %750
    %752 = vrot.lane.b32.xlu0 %v176, 64
    %v753 = vpop.permute.xlu0 %752
    %v755 = vsel %vm86, %v751, 0
    %v758 = vsel %vm86, %v753, 0
    %760 = vmatprep.subr.bf16.mxu0 0
    %761 = vmatpush1.bf16.xpose.msra.mxu0 %v758
    %762 = vmatprep.subr.bf16.mxu0 0
    %763 = vmatpush1.bf16.xpose.msra.mxu0 0
    %764 = vmatprep.subr.bf16.mxu0 0
    %765 = vmatpush1.bf16.xpose.msra.mxu0 0
    %766 = vmatprep.subr.bf16.mxu0 0
    %767 = vmatpush1.bf16.xpose.msra.mxu0 0
    %768 = vmatprep.subr.bf16.mxu0 0
    %769 = vmatpush1.bf16.xpose.msra.mxu0 0
    %770 = vmatprep.subr.bf16.mxu0 0
    %771 = vmatpush1.bf16.xpose.msra.mxu0 0
    %772 = vmatprep.subr.bf16.mxu0 0
    %773 = vmatpush1.bf16.xpose.msra.mxu0 0
    %774 = vmatprep.subr.bf16.mxu0 0
    %775 = vmatpush1.bf16.xpose.msra.mxu0 0
    %776 = vmatprep.subr.bf16.mxu0 0
    %777 = vmatpush1.bf16.xpose.msra.mxu0 0
    %778 = vmatprep.subr.bf16.mxu0 0
    %779 = vmatpush1.bf16.xpose.msra.mxu0 0
    %780 = vmatprep.subr.bf16.mxu0 0
    %781 = vmatpush1.bf16.xpose.msra.mxu0 0
    %782 = vmatprep.subr.bf16.mxu0 0
    %783 = vmatpush1.bf16.xpose.msra.mxu0 0
    %784 = vmatprep.subr.bf16.mxu0 0
    %785 = vmatpush1.bf16.xpose.msra.mxu0 0
    %786 = vmatprep.subr.bf16.mxu0 0
    %787 = vmatpush1.bf16.xpose.msra.mxu0 0
    %788 = vmatprep.subr.bf16.mxu0 0
    %789 = vmatpush1.bf16.xpose.msra.mxu0 0
    %790 = vmatprep.subr.bf16.mxu0 0
    %791 = vmatpush1.bf16.xpose.msra.mxu0 0
    %792 = vmatprep.mubr.bf16.mxu0 0
    %793 = vmatmul.mubr.bf16.gmra.mrb[0].mxu0 %v755
    %v794 = vpop.f32.mrb[0].mxu0
    %v795 = vadd.f32 0.0, %v794
    %v796 = vpop.f32.mrb[0].mxu0
    %v797 = vpop.f32.mrb[0].mxu0
    %v798 = vpop.f32.mrb[0].mxu0
    %799 = vdwg.mxu0
    %800 = vrot.lane.b32.xlu0 %v175, 64
    %v801 = vpop.permute.xlu0 %800
    %802 = vrot.lane.b32.xlu0 %v177, 64
    %v803 = vpop.permute.xlu0 %802
    %v805 = vsel %vm86, %v801, 0
    %v808 = vsel %vm86, %v803, 0
    %810 = vmatprep.subr.bf16.mxu0 0
    %811 = vmatpush1.bf16.xpose.msra.mxu0 %v808
    %812 = vmatprep.subr.bf16.mxu0 0
    %813 = vmatpush1.bf16.xpose.msra.mxu0 0
    %814 = vmatprep.subr.bf16.mxu0 0
    %815 = vmatpush1.bf16.xpose.msra.mxu0 0
    %816 = vmatprep.subr.bf16.mxu0 0
    %817 = vmatpush1.bf16.xpose.msra.mxu0 0
    %818 = vmatprep.subr.bf16.mxu0 0
    %819 = vmatpush1.bf16.xpose.msra.mxu0 0
    %820 = vmatprep.subr.bf16.mxu0 0
    %821 = vmatpush1.bf16.xpose.msra.mxu0 0
    %822 = vmatprep.subr.bf16.mxu0 0
    %823 = vmatpush1.bf16.xpose.msra.mxu0 0
    %824 = vmatprep.subr.bf16.mxu0 0
    %825 = vmatpush1.bf16.xpose.msra.mxu0 0
    %826 = vmatprep.subr.bf16.mxu0 0
    %827 = vmatpush1.bf16.xpose.msra.mxu0 0
    %828 = vmatprep.subr.bf16.mxu0 0
    %829 = vmatpush1.bf16.xpose.msra.mxu0 0
    %830 = vmatprep.subr.bf16.mxu0 0
    %831 = vmatpush1.bf16.xpose.msra.mxu0 0
    %832 = vmatprep.subr.bf16.mxu0 0
    %833 = vmatpush1.bf16.xpose.msra.mxu0 0
    %834 = vmatprep.subr.bf16.mxu0 0
    %835 = vmatpush1.bf16.xpose.msra.mxu0 0
    %836 = vmatprep.subr.bf16.mxu0 0
    %837 = vmatpush1.bf16.xpose.msra.mxu0 0
    %838 = vmatprep.subr.bf16.mxu0 0
    %839 = vmatpush1.bf16.xpose.msra.mxu0 0
    %840 = vmatprep.subr.bf16.mxu0 0
    %841 = vmatpush1.bf16.xpose.msra.mxu0 0
    %842 = vmatprep.mubr.bf16.mxu0 0
    %843 = vmatmul.mubr.bf16.gmra.mrb[0].mxu0 %v805
    %v844 = vpop.f32.mrb[0].mxu0
    %v845 = vadd.f32 0.0, %v844
    %v846 = vpop.f32.mrb[0].mxu0
    %v847 = vpop.f32.mrb[0].mxu0
    %v848 = vpop.f32.mrb[0].mxu0
    %849 = vdwg.mxu0
    %v850 = vsel %vm272, %v795, -inf
    %851 = vmax.xlane.f32.xlu0 %v850
    %v852 = vpop.xlane.xlu0 %851
    %v853 = vsel %vm272, %v845, -inf
    %854 = vmax.xlane.f32.xlu0 %v853
    %v855 = vpop.xlane.xlu0 %854
    %v856 = vsub.f32 %v795, %v852
    %v857 = vsub.f32 %v845, %v855
    %v858 = vmul.f32 %v856, 1.442695
    %v859 = vpow.pop %v858
    %v860 = vmul.f32 %v857, 1.442695
    %v861 = vpow.pop %v860
    %v862 = vsel %vm272, %v859, 0.0
    %863 = vadd.xlane.f32.xlu0 %v862
    %v864 = vpop.xlane.xlu0 %863
    %v865 = vsel %vm272, %v861, 0.0
    %866 = vadd.xlane.f32.xlu0 %v865
    %v867 = vpop.xlane.xlu0 %866
    %v868 = vrcp.pop %v864
    %v869 = vrcp.pop %v867
    %v870 = vmul.f32 %v859, %v868
    %v871 = vmul.f32 %v861, %v869
    %v872 = vpack.c.bf16 %v870, %v870
    %v873 = vpack.c.bf16 %v871, %v871
    %874 = vrot.lane.b32.xlu0 %v178, 64
    %v875 = vpop.permute.xlu0 %874
    %v877 = vsel %vm272, %v872, 0
    %v880 = vsel %vm300, %v875, 0
    %882 = vmatprep.subr.bf16.mxu0 0
    %883 = vmatpush1.bf16.msra.mxu0 %v880
    %884 = vmatprep.subr.bf16.mxu0 0
    %885 = vmatpush1.bf16.msra.mxu0 0
    %886 = vmatprep.subr.bf16.mxu0 0
    %887 = vmatpush1.bf16.msra.mxu0 0
    %888 = vmatprep.subr.bf16.mxu0 0
    %889 = vmatpush1.bf16.msra.mxu0 0
    %890 = vmatprep.subr.bf16.mxu0 0
    %891 = vmatpush1.bf16.msra.mxu0 0
    %892 = vmatprep.subr.bf16.mxu0 0
    %893 = vmatpush1.bf16.msra.mxu0 0
    %894 = vmatprep.subr.bf16.mxu0 0
    %895 = vmatpush1.bf16.msra.mxu0 0
    %896 = vmatprep.subr.bf16.mxu0 0
    %897 = vmatpush1.bf16.msra.mxu0 0
    %898 = vmatprep.subr.bf16.mxu0 0
    %899 = vmatpush1.bf16.msra.mxu0 0
    %900 = vmatprep.subr.bf16.mxu0 0
    %901 = vmatpush1.bf16.msra.mxu0 0
    %902 = vmatprep.subr.bf16.mxu0 0
    %903 = vmatpush1.bf16.msra.mxu0 0
    %904 = vmatprep.subr.bf16.mxu0 0
    %905 = vmatpush1.bf16.msra.mxu0 0
    %906 = vmatprep.subr.bf16.mxu0 0
    %907 = vmatpush1.bf16.msra.mxu0 0
    %908 = vmatprep.subr.bf16.mxu0 0
    %909 = vmatpush1.bf16.msra.mxu0 0
    %910 = vmatprep.subr.bf16.mxu0 0
    %911 = vmatpush1.bf16.msra.mxu0 0
    %912 = vmatprep.subr.bf16.mxu0 0
    %913 = vmatpush1.bf16.msra.mxu0 0
    %914 = vmatprep.mubr.bf16.mxu0 0
    %915 = vmatmul.mubr.bf16.gmra.mrb[0].mxu0 %v877
    %v916 = vpop.f32.mrb[0].mxu0
    %v917 = vadd.f32 0.0, %v916
    %v918 = vpop.f32.mrb[0].mxu0
    %v919 = vpop.f32.mrb[0].mxu0
    %v920 = vpop.f32.mrb[0].mxu0
    %921 = vdwg.mxu0
    %922 = vrot.lane.b32.xlu0 %v179, 64
    %v923 = vpop.permute.xlu0 %922
    %v925 = vsel %vm272, %v873, 0
    %v928 = vsel %vm300, %v923, 0
    %930 = vmatprep.subr.bf16.mxu0 0
    %931 = vmatpush1.bf16.msra.mxu0 %v928
    %932 = vmatprep.subr.bf16.mxu0 0
    %933 = vmatpush1.bf16.msra.mxu0 0
    %934 = vmatprep.subr.bf16.mxu0 0
    %935 = vmatpush1.bf16.msra.mxu0 0
    %936 = vmatprep.subr.bf16.mxu0 0
    %937 = vmatpush1.bf16.msra.mxu0 0
    %938 = vmatprep.subr.bf16.mxu0 0
    %939 = vmatpush1.bf16.msra.mxu0 0
    %940 = vmatprep.subr.bf16.mxu0 0
    %941 = vmatpush1.bf16.msra.mxu0 0
    %942 = vmatprep.subr.bf16.mxu0 0
    %943 = vmatpush1.bf16.msra.mxu0 0
    %944 = vmatprep.subr.bf16.mxu0 0
    %945 = vmatpush1.bf16.msra.mxu0 0
    %946 = vmatprep.subr.bf16.mxu0 0
    %947 = vmatpush1.bf16.msra.mxu0 0
    %948 = vmatprep.subr.bf16.mxu0 0
    %949 = vmatpush1.bf16.msra.mxu0 0
    %950 = vmatprep.subr.bf16.mxu0 0
    %951 = vmatpush1.bf16.msra.mxu0 0
    %952 = vmatprep.subr.bf16.mxu0 0
    %953 = vmatpush1.bf16.msra.mxu0 0
    %954 = vmatprep.subr.bf16.mxu0 0
    %955 = vmatpush1.bf16.msra.mxu0 0
    %956 = vmatprep.subr.bf16.mxu0 0
    %957 = vmatpush1.bf16.msra.mxu0 0
    %958 = vmatprep.subr.bf16.mxu0 0
    %959 = vmatpush1.bf16.msra.mxu0 0
    %960 = vmatprep.subr.bf16.mxu0 0
    %961 = vmatpush1.bf16.msra.mxu0 0
    %962 = vmatprep.mubr.bf16.mxu0 0
    %963 = vmatmul.mubr.bf16.gmra.mrb[0].mxu0 %v925
    %v964 = vpop.f32.mrb[0].mxu0
    %v965 = vadd.f32 0.0, %v964
    %v966 = vpop.f32.mrb[0].mxu0
    %v967 = vpop.f32.mrb[0].mxu0
    %v968 = vpop.f32.mrb[0].mxu0
    %969 = vdwg.mxu0
    %v970 = vld [vmem:[%s3 + $0x20] sm:$0xf]
    %v971 = vld [vmem:[%s3 + $0x24] sm:$0xf]
    %v972 = vld [vmem:[%s3 + $0x28] sm:$0xf]
    %v973 = vld [vmem:[%s3 + $0x2c] sm:$0xf]
    %v974 = vpack.c.bf16 %v917, %v917
    %v975 = vpack.c.bf16 %v965, %v965
    %v978 = vunpack.c.l.b16 %v974
    %v979 = vunpack.c.l.b16 %v975
    %v980 = vpack.c.b16 %v979, %v978
    %v985 = vunpack.c.l.b16 %v970
    %v986 = vunpack.c.l.b16 %v971
    %v987 = vunpack.c.l.b16 %v972
    %v988 = vunpack.c.l.b16 %v973
    %v989 = vpack.c.b16 %v986, %v985
    %v990 = vpack.c.b16 %v988, %v987
    %v994 = vsel %vm86, %v980, 0
    %996 = vmatprep.subr.bf16.mxu0 0
    %997 = vmatpush1.bf16.msra.mxu0 %v989
    %998 = vmatprep.subr.bf16.mxu0 0
    %999 = vmatpush1.bf16.msra.mxu0 %v990
    %1000 = vmatprep.subr.bf16.mxu0 0
    %1001 = vmatpush1.bf16.msra.mxu0 0
    %1002 = vmatprep.subr.bf16.mxu0 0
    %1003 = vmatpush1.bf16.msra.mxu0 0
    %1004 = vmatprep.subr.bf16.mxu0 0
    %1005 = vmatpush1.bf16.msra.mxu0 0
    %1006 = vmatprep.subr.bf16.mxu0 0
    %1007 = vmatpush1.bf16.msra.mxu0 0
    %1008 = vmatprep.subr.bf16.mxu0 0
    %1009 = vmatpush1.bf16.msra.mxu0 0
    %1010 = vmatprep.subr.bf16.mxu0 0
    %1011 = vmatpush1.bf16.msra.mxu0 0
    %1012 = vmatprep.subr.bf16.mxu0 0
    %1013 = vmatpush1.bf16.msra.mxu0 0
    %1014 = vmatprep.subr.bf16.mxu0 0
    %1015 = vmatpush1.bf16.msra.mxu0 0
    %1016 = vmatprep.subr.bf16.mxu0 0
    %1017 = vmatpush1.bf16.msra.mxu0 0
    %1018 = vmatprep.subr.bf16.mxu0 0
    %1019 = vmatpush1.bf16.msra.mxu0 0
    %1020 = vmatprep.subr.bf16.mxu0 0
    %1021 = vmatpush1.bf16.msra.mxu0 0
    %1022 = vmatprep.subr.bf16.mxu0 0
    %1023 = vmatpush1.bf16.msra.mxu0 0
    %1024 = vmatprep.subr.bf16.mxu0 0
    %1025 = vmatpush1.bf16.msra.mxu0 0
    %1026 = vmatprep.subr.bf16.mxu0 0
    %1027 = vmatpush1.bf16.msra.mxu0 0
    %1028 = vmatprep.mubr.bf16.mxu0 0
    %1029 = vmatmul.mubr.bf16.gmra.mrb[0].mxu0 %v994
    %v1030 = vpop.f32.mrb[0].mxu0
    %v1031 = vadd.f32 0.0, %v1030
    %v1032 = vpop.f32.mrb[0].mxu0
    %v1033 = vpop.f32.mrb[0].mxu0
    %v1034 = vadd.f32 0.0, %v1033
    %v1035 = vpop.f32.mrb[0].mxu0
    %1036 = vdwg.mxu0
    %v1037 = vadd.f32 %v744, %v1031
    %v1038 = vadd.f32 %v747, %v1034
    %1039 = vrot.lane.b32.xlu0 %v174, 32
    %v1040 = vpop.permute.xlu0 %1039
    %1041 = vrot.lane.b32.xlu0 %v176, 32
    %v1042 = vpop.permute.xlu0 %1041
    %v1044 = vsel %vm86, %v1040, 0
    %v1047 = vsel %vm86, %v1042, 0
    %1049 = vmatprep.subr.bf16.mxu0 0
    %1050 = vmatpush1.bf16.xpose.msra.mxu0 %v1047
    %1051 = vmatprep.subr.bf16.mxu0 0
    %1052 = vmatpush1.bf16.xpose.msra.mxu0 0
    %1053 = vmatprep.subr.bf16.mxu0 0
    %1054 = vmatpush1.bf16.xpose.msra.mxu0 0
    %1055 = vmatprep.subr.bf16.mxu0 0
    %1056 = vmatpush1.bf16.xpose.msra.mxu0 0
    %1057 = vmatprep.subr.bf16.mxu0 0
    %1058 = vmatpush1.bf16.xpose.msra.mxu0 0
    %1059 = vmatprep.subr.bf16.mxu0 0
    %1060 = vmatpush1.bf16.xpose.msra.mxu0 0
    %1061 = vmatprep.subr.bf16.mxu0 0
    %1062 = vmatpush1.bf16.xpose.msra.mxu0 0
    %1063 = vmatprep.subr.bf16.mxu0 0
    %1064 = vmatpush1.bf16.xpose.msra.mxu0 0
    %1065 = vmatprep.subr.bf16.mxu0 0
    %1066 = vmatpush1.bf16.xpose.msra.mxu0 0
    %1067 = vmatprep.subr.bf16.mxu0 0
    %1068 = vmatpush1.bf16.xpose.msra.mxu0 0
    %1069 = vmatprep.subr.bf16.mxu0 0
    %1070 = vmatpush1.bf16.xpose.msra.mxu0 0
    %1071 = vmatprep.subr.bf16.mxu0 0
    %1072 = vmatpush1.bf16.xpose.msra.mxu0 0
    %1073 = vmatprep.subr.bf16.mxu0 0
    %1074 = vmatpush1.bf16.xpose.msra.mxu0 0
    %1075 = vmatprep.subr.bf16.mxu0 0
    %1076 = vmatpush1.bf16.xpose.msra.mxu0 0
    %1077 = vmatprep.subr.bf16.mxu0 0
    %1078 = vmatpush1.bf16.xpose.msra.mxu0 0
    %1079 = vmatprep.subr.bf16.mxu0 0
    %1080 = vmatpush1.bf16.xpose.msra.mxu0 0
    %1081 = vmatprep.mubr.bf16.mxu0 0
    %1082 = vmatmul.mubr.bf16.gmra.mrb[0].mxu0 %v1044
    %v1083 = vpop.f32.mrb[0].mxu0
    %v1084 = vadd.f32 0.0, %v1083
    %v1085 = vpop.f32.mrb[0].mxu0
    %v1086 = vpop.f32.mrb[0].mxu0
    %v1087 = vpop.f32.mrb[0].mxu0
    %1088 = vdwg.mxu0
    %1089 = vrot.lane.b32.xlu0 %v175, 32
    %v1090 = vpop.permute.xlu0 %1089
    %1091 = vrot.lane.b32.xlu0 %v177, 32
    %v1092 = vpop.permute.xlu0 %1091
    %v1094 = vsel %vm86, %v1090, 0
    %v1097 = vsel %vm86, %v1092, 0
    %1099 = vmatprep.subr.bf16.mxu0 0
    %1100 = vmatpush1.bf16.xpose.msra.mxu0 %v1097
    %1101 = vmatprep.subr.bf16.mxu0 0
    %1102 = vmatpush1.bf16.xpose.msra.mxu0 0
    %1103 = vmatprep.subr.bf16.mxu0 0
    %1104 = vmatpush1.bf16.xpose.msra.mxu0 0
    %1105 = vmatprep.subr.bf16.mxu0 0
    %1106 = vmatpush1.bf16.xpose.msra.mxu0 0
    %1107 = vmatprep.subr.bf16.mxu0 0
    %1108 = vmatpush1.bf16.xpose.msra.mxu0 0
    %1109 = vmatprep.subr.bf16.mxu0 0
    %1110 = vmatpush1.bf16.xpose.msra.mxu0 0
    %1111 = vmatprep.subr.bf16.mxu0 0
    %1112 = vmatpush1.bf16.xpose.msra.mxu0 0
    %1113 = vmatprep.subr.bf16.mxu0 0
    %1114 = vmatpush1.bf16.xpose.msra.mxu0 0
    %1115 = vmatprep.subr.bf16.mxu0 0
    %1116 = vmatpush1.bf16.xpose.msra.mxu0 0
    %1117 = vmatprep.subr.bf16.mxu0 0
    %1118 = vmatpush1.bf16.xpose.msra.mxu0 0
    %1119 = vmatprep.subr.bf16.mxu0 0
    %1120 = vmatpush1.bf16.xpose.msra.mxu0 0
    %1121 = vmatprep.subr.bf16.mxu0 0
    %1122 = vmatpush1.bf16.xpose.msra.mxu0 0
    %1123 = vmatprep.subr.bf16.mxu0 0
    %1124 = vmatpush1.bf16.xpose.msra.mxu0 0
    %1125 = vmatprep.subr.bf16.mxu0 0
    %1126 = vmatpush1.bf16.xpose.msra.mxu0 0
    %1127 = vmatprep.subr.bf16.mxu0 0
    %1128 = vmatpush1.bf16.xpose.msra.mxu0 0
    %1129 = vmatprep.subr.bf16.mxu0 0
    %1130 = vmatpush1.bf16.xpose.msra.mxu0 0
    %1131 = vmatprep.mubr.bf16.mxu0 0
    %1132 = vmatmul.mubr.bf16.gmra.mrb[0].mxu0 %v1094
    %v1133 = vpop.f32.mrb[0].mxu0
    %v1134 = vadd.f32 0.0, %v1133
    %v1135 = vpop.f32.mrb[0].mxu0
    %v1136 = vpop.f32.mrb[0].mxu0
    %v1137 = vpop.f32.mrb[0].mxu0
    %1138 = vdwg.mxu0
    %v1139 = vsel %vm272, %v1084, -inf
    %1140 = vmax.xlane.f32.xlu0 %v1139
    %v1141 = vpop.xlane.xlu0 %1140
    %v1142 = vsel %vm272, %v1134, -inf
    %1143 = vmax.xlane.f32.xlu0 %v1142
    %v1144 = vpop.xlane.xlu0 %1143
    %v1145 = vsub.f32 %v1084, %v1141
    %v1146 = vsub.f32 %v1134, %v1144
    %v1147 = vmul.f32 %v1145, 1.442695
    %v1148 = vpow.pop %v1147
    %v1149 = vmul.f32 %v1146, 1.442695
    %v1150 = vpow.pop %v1149
    %v1151 = vsel %vm272, %v1148, 0.0
    %1152 = vadd.xlane.f32.xlu0 %v1151
    %v1153 = vpop.xlane.xlu0 %1152
    %v1154 = vsel %vm272, %v1150, 0.0
    %1155 = vadd.xlane.f32.xlu0 %v1154
    %v1156 = vpop.xlane.xlu0 %1155
    %v1157 = vrcp.pop %v1153
    %v1158 = vrcp.pop %v1156
    %v1159 = vmul.f32 %v1148, %v1157
    %v1160 = vmul.f32 %v1150, %v1158
    %v1161 = vpack.c.bf16 %v1159, %v1159
    %v1162 = vpack.c.bf16 %v1160, %v1160
    %1163 = vrot.lane.b32.xlu0 %v178, 32
    %v1164 = vpop.permute.xlu0 %1163
    %v1166 = vsel %vm272, %v1161, 0
    %v1169 = vsel %vm300, %v1164, 0
    %1171 = vmatprep.subr.bf16.mxu0 0
    %1172 = vmatpush1.bf16.msra.mxu0 %v1169
    %1173 = vmatprep.subr.bf16.mxu0 0
    %1174 = vmatpush1.bf16.msra.mxu0 0
    %1175 = vmatprep.subr.bf16.mxu0 0
    %1176 = vmatpush1.bf16.msra.mxu0 0
    %1177 = vmatprep.subr.bf16.mxu0 0
    %1178 = vmatpush1.bf16.msra.mxu0 0
    %1179 = vmatprep.subr.bf16.mxu0 0
    %1180 = vmatpush1.bf16.msra.mxu0 0
    %1181 = vmatprep.subr.bf16.mxu0 0
    %1182 = vmatpush1.bf16.msra.mxu0 0
    %1183 = vmatprep.subr.bf16.mxu0 0
    %1184 = vmatpush1.bf16.msra.mxu0 0
    %1185 = vmatprep.subr.bf16.mxu0 0
    %1186 = vmatpush1.bf16.msra.mxu0 0
    %1187 = vmatprep.subr.bf16.mxu0 0
    %1188 = vmatpush1.bf16.msra.mxu0 0
    %1189 = vmatprep.subr.bf16.mxu0 0
    %1190 = vmatpush1.bf16.msra.mxu0 0
    %1191 = vmatprep.subr.bf16.mxu0 0
    %1192 = vmatpush1.bf16.msra.mxu0 0
    %1193 = vmatprep.subr.bf16.mxu0 0
    %1194 = vmatpush1.bf16.msra.mxu0 0
    %1195 = vmatprep.subr.bf16.mxu0 0
    %1196 = vmatpush1.bf16.msra.mxu0 0
    %1197 = vmatprep.subr.bf16.mxu0 0
    %1198 = vmatpush1.bf16.msra.mxu0 0
    %1199 = vmatprep.subr.bf16.mxu0 0
    %1200 = vmatpush1.bf16.msra.mxu0 0
    %1201 = vmatprep.subr.bf16.mxu0 0
    %1202 = vmatpush1.bf16.msra.mxu0 0
    %1203 = vmatprep.mubr.bf16.mxu0 0
    %1204 = vmatmul.mubr.bf16.gmra.mrb[0].mxu0 %v1166
    %v1205 = vpop.f32.mrb[0].mxu0
    %v1206 = vadd.f32 0.0, %v1205
    %v1207 = vpop.f32.mrb[0].mxu0
    %v1208 = vpop.f32.mrb[0].mxu0
    %v1209 = vpop.f32.mrb[0].mxu0
    %1210 = vdwg.mxu0
    %1211 = vrot.lane.b32.xlu0 %v179, 32
    %v1212 = vpop.permute.xlu0 %1211
    %v1214 = vsel %vm272, %v1162, 0
    %v1217 = vsel %vm300, %v1212, 0
    %1219 = vmatprep.subr.bf16.mxu0 0
    %1220 = vmatpush1.bf16.msra.mxu0 %v1217
    %1221 = vmatprep.subr.bf16.mxu0 0
    %1222 = vmatpush1.bf16.msra.mxu0 0
    %1223 = vmatprep.subr.bf16.mxu0 0
    %1224 = vmatpush1.bf16.msra.mxu0 0
    %1225 = vmatprep.subr.bf16.mxu0 0
    %1226 = vmatpush1.bf16.msra.mxu0 0
    %1227 = vmatprep.subr.bf16.mxu0 0
    %1228 = vmatpush1.bf16.msra.mxu0 0
    %1229 = vmatprep.subr.bf16.mxu0 0
    %1230 = vmatpush1.bf16.msra.mxu0 0
    %1231 = vmatprep.subr.bf16.mxu0 0
    %1232 = vmatpush1.bf16.msra.mxu0 0
    %1233 = vmatprep.subr.bf16.mxu0 0
    %1234 = vmatpush1.bf16.msra.mxu0 0
    %1235 = vmatprep.subr.bf16.mxu0 0
    %1236 = vmatpush1.bf16.msra.mxu0 0
    %1237 = vmatprep.subr.bf16.mxu0 0
    %1238 = vmatpush1.bf16.msra.mxu0 0
    %1239 = vmatprep.subr.bf16.mxu0 0
    %1240 = vmatpush1.bf16.msra.mxu0 0
    %1241 = vmatprep.subr.bf16.mxu0 0
    %1242 = vmatpush1.bf16.msra.mxu0 0
    %1243 = vmatprep.subr.bf16.mxu0 0
    %1244 = vmatpush1.bf16.msra.mxu0 0
    %1245 = vmatprep.subr.bf16.mxu0 0
    %1246 = vmatpush1.bf16.msra.mxu0 0
    %1247 = vmatprep.subr.bf16.mxu0 0
    %1248 = vmatpush1.bf16.msra.mxu0 0
    %1249 = vmatprep.subr.bf16.mxu0 0
    %1250 = vmatpush1.bf16.msra.mxu0 0
    %1251 = vmatprep.mubr.bf16.mxu0 0
    %1252 = vmatmul.mubr.bf16.gmra.mrb[0].mxu0 %v1214
    %v1253 = vpop.f32.mrb[0].mxu0
    %v1254 = vadd.f32 0.0, %v1253
    %v1255 = vpop.f32.mrb[0].mxu0
    %v1256 = vpop.f32.mrb[0].mxu0
    %v1257 = vpop.f32.mrb[0].mxu0
    %1258 = vdwg.mxu0
    %v1259 = vld [vmem:[%s3 + $0x30] sm:$0xf]
    %v1260 = vld [vmem:[%s3 + $0x34] sm:$0xf]
    %v1261 = vld [vmem:[%s3 + $0x38] sm:$0xf]
    %v1262 = vld [vmem:[%s3 + $0x3c] sm:$0xf]
    %v1263 = vpack.c.bf16 %v1206, %v1206
    %v1264 = vpack.c.bf16 %v1254, %v1254
    %v1267 = vunpack.c.l.b16 %v1263
    %v1268 = vunpack.c.l.b16 %v1264
    %v1269 = vpack.c.b16 %v1268, %v1267
    %v1274 = vunpack.c.l.b16 %v1259
    %v1275 = vunpack.c.l.b16 %v1260
    %v1276 = vunpack.c.l.b16 %v1261
    %v1277 = vunpack.c.l.b16 %v1262
    %v1278 = vpack.c.b16 %v1275, %v1274
    %v1279 = vpack.c.b16 %v1277, %v1276
    %v1283 = vsel %vm86, %v1269, 0
    %1285 = vmatprep.subr.bf16.mxu0 0
    %1286 = vmatpush1.bf16.msra.mxu0 %v1278
    %1287 = vmatprep.subr.bf16.mxu0 0
    %1288 = vmatpush1.bf16.msra.mxu0 %v1279
    %1289 = vmatprep.subr.bf16.mxu0 0
    %1290 = vmatpush1.bf16.msra.mxu0 0
    %1291 = vmatprep.subr.bf16.mxu0 0
    %1292 = vmatpush1.bf16.msra.mxu0 0
    %1293 = vmatprep.subr.bf16.mxu0 0
    %1294 = vmatpush1.bf16.msra.mxu0 0
    %1295 = vmatprep.subr.bf16.mxu0 0
    %1296 = vmatpush1.bf16.msra.mxu0 0
    %1297 = vmatprep.subr.bf16.mxu0 0
    %1298 = vmatpush1.bf16.msra.mxu0 0
    %1299 = vmatprep.subr.bf16.mxu0 0
    %1300 = vmatpush1.bf16.msra.mxu0 0
    %1301 = vmatprep.subr.bf16.mxu0 0
    %1302 = vmatpush1.bf16.msra.mxu0 0
    %1303 = vmatprep.subr.bf16.mxu0 0
    %1304 = vmatpush1.bf16.msra.mxu0 0
    %1305 = vmatprep.subr.bf16.mxu0 0
    %1306 = vmatpush1.bf16.msra.mxu0 0
    %1307 = vmatprep.subr.bf16.mxu0 0
    %1308 = vmatpush1.bf16.msra.mxu0 0
    %1309 = vmatprep.subr.bf16.mxu0 0
    %1310 = vmatpush1.bf16.msra.mxu0 0
    %1311 = vmatprep.subr.bf16.mxu0 0
    %1312 = vmatpush1.bf16.msra.mxu0 0
    %1313 = vmatprep.subr.bf16.mxu0 0
    %1314 = vmatpush1.bf16.msra.mxu0 0
    %1315 = vmatprep.subr.bf16.mxu0 0
    %1316 = vmatpush1.bf16.msra.mxu0 0
    %1317 = vmatprep.mubr.bf16.mxu0 0
    %1318 = vmatmul.mubr.bf16.gmra.mrb[0].mxu0 %v1283
    %v1319 = vpop.f32.mrb[0].mxu0
    %v1320 = vadd.f32 0.0, %v1319
    %v1321 = vpop.f32.mrb[0].mxu0
    %v1322 = vpop.f32.mrb[0].mxu0
    %v1323 = vadd.f32 0.0, %v1322
    %v1324 = vpop.f32.mrb[0].mxu0
    %1325 = vdwg.mxu0
    %v1326 = vadd.f32 %v1037, %v1320
    %v1327 = vadd.f32 %v1038, %v1323
    %v1328 = vld [vmem:[%s4] sm:$0x1]
    %v1330 = vlaneseq
    %v1331 = vshrl.u32 %v1330, 7
    %v1332 = vsub.s32 0, %v1331
    %v1333 = vrot.slane %v1328, %v1332
    %v1335 = vadd.f32 %v1326, %v1333
    %v1336 = vadd.f32 %v1327, %v1333
    %1337 = vst.msk [vmem:[#allocation2] sm:$0xff] %vm86, %v1335
    %1338 = vst.msk [vmem:[#allocation2 + $0x8] sm:$0xff] %vm86, %v1336
    // Predicated region
    $region22: #{tpu_custom_call.1} parent=1 // pred_check
      _
    $region23: #{tpu_custom_call.1} parent=1 // pred_check_branch
      %1340 = sbr.rel (0) target = $region25
    $region24: #{tpu_custom_call.1} parent=1 // pred_region
      %s1342 = ssub.s32 256, 256
      %1343 = vsyncadd [#allocation3], %s1342
      %s1344 = sshll.u32 [#allocation2], 4
      %s1345 = int_to_ptr.vmem [resolvable:$true] %s1344
      %1350 = dma.vmem_to_hbm [thread:$0]  %s1345, 256, %s5, [#allocation3], 128, 128, 8
    $region25: #{tpu_custom_call.1} parent=1 // pred_fallthru
      _
    // Predicated region
    $region26: #{tpu_custom_call.1} parent=1 // pred_check
      _
    $region27: #{tpu_custom_call.1} parent=1 // pred_check_branch
      %1352 = sbr.rel (0) target = $region29
    $region28: #{tpu_custom_call.1} parent=1 // pred_region
      %1353 = dma.done [#allocation3], 256
    $region29: #{tpu_custom_call.1} parent=1 // pred_fallthru
      _
    %1354 = vsyncpa [#allocation3], 1

</llo_original>
